<compile_context>
chip_gen: v7x
topology: tpu7x:2x2x1
jax: 0.10.0
libtpu: 0.0.40
codegen_flags: <defaults>
</compile_context>

<pallas_src>
import functools

import jax
import jax.numpy as jnp
from jax import lax
from jax.experimental import pallas as pl
from jax.experimental.pallas import tpu as pltpu


def _disp_head_kernel(x_ref, w1_ref, b1_ref, w2_ref, b2_ref,
                      out_ref, xpad_ref, p1_ref, hflat_ref, *, H, W, Bn):
    # x_ref    : (Bn, Cin, H*W)     f32   raw (unpadded, un-cast) input images
    # w1_ref   : (Chid, 9*Cin)      bf16  im2col conv1 weights (tap-major)
    # b1_ref   : (Chid, 1)          f32
    # w2_ref   : (Cout, 9*Chid)     bf16  im2col conv2 weights (tap-major)
    # b2_ref   : (Cout, 1)          f32
    # out_ref  : (Bn, Cout, H*Wp)   f32   lane-dense output
    # xpad_ref : (Cin, Hp*Wp + 2)   bf16  scratch: flat zero-padded input
    # p1_ref   : (9*Cin, H*Wp)      bf16  scratch: conv1 im2col slab
    # hflat_ref: (Chid, Hp*Wp + 2)  f32   scratch: flat zero-padded hidden
    Wp = W + 2
    HWp = H * Wp
    Cin = x_ref.shape[1]
    Chid = w1_ref.shape[0]
    Cout = w2_ref.shape[0]

    # Valid-output-column mask: flat position j = y*Wp + x is a real pixel iff
    # x < W.  Built in-kernel (no extra HBM input); hoisted out of the image loop.
    col = lax.broadcasted_iota(jnp.int32, (1, HWp), 1)
    mask = ((col % Wp) < W).astype(jnp.float32)

    for bi in range(Bn):
        # ---- flat zero-padded bf16 input, built in VMEM ---------------------
        # Interior rows first, then the border runs, so the borders (read by
        # every valid 3x3 patch) unambiguously own their final zeros.
        for r in range(H):
            xpad_ref[:, (r + 1) * Wp + 1:(r + 1) * Wp + 1 + W] = (
                x_ref[bi, :, r * W:(r + 1) * W].astype(jnp.bfloat16))
        xpad_ref[:, 0:Wp + 1] = jnp.zeros((Cin, Wp + 1), jnp.bfloat16)
        for r in range(1, H):   # right border of row r + left border of row r+1
            xpad_ref[:, r * Wp + W + 1:r * Wp + W + 3] = jnp.zeros(
                (Cin, 2), jnp.bfloat16)
        xpad_ref[:, (H + 1) * Wp - 1:(H + 2) * Wp + 2] = jnp.zeros(
            (Cin, Wp + 3), jnp.bfloat16)

        # ---- conv1: im2col slab (9 contiguous lane slices) + ONE MXU matmul -
        for t in range(9):
            dy, dx = divmod(t, 3)
            off = dy * Wp + dx
            p1_ref[t * Cin:(t + 1) * Cin, :] = xpad_ref[:, off:off + HWp]
        h = jnp.dot(w1_ref[...], p1_ref[...],
                    preferred_element_type=jnp.float32)
        h = jnp.maximum(h + b1_ref[...], 0.0)
        h = h * mask    # junk columns (x >= W) -> 0; they land on hflat borders

        # ---- flat zero-padded hidden: one contiguous interior store, then the
        #      top/bottom border runs (borders own their final value). --------
        hflat_ref[:, Wp + 1:Wp + 1 + HWp] = h
        hflat_ref[:, 0:Wp + 1] = jnp.zeros((Chid, Wp + 1), jnp.float32)
        hflat_ref[:, (H + 1) * Wp:(H + 2) * Wp + 2] = jnp.zeros(
            (Chid, Wp + 2), jnp.float32)

        # ---- conv2 (Cout == 1): NO im2col slab.  9 accumulated bf16 matmuls
        #      reading tap slices directly from the padded hidden (cast on load,
        #      scratch stays f32 so no packed partial stores). -----------------
        acc = jnp.zeros((Cout, HWp), jnp.float32)
        for t in range(9):
            dy, dx = divmod(t, 3)
            off = dy * Wp + dx
            tap = hflat_ref[:, off:off + HWp].astype(jnp.bfloat16)
            acc = acc + jnp.dot(w2_ref[:, t * Chid:(t + 1) * Chid], tap,
                                preferred_element_type=jnp.float32)
        out_ref[bi, :, :] = acc + b2_ref[...]


def prepare_disp_head_params(w1_oihw, b1, w2_oihw, b2):
    """One-time weight prep (hoisted out of the per-call path).

    w1_oihw: (Chid, Cin, 3, 3), w2_oihw: (Cout, Chid, 3, 3)  (PyTorch layout).
    Produces tap-major / channel-minor im2col matrices in bf16 for the MXU.
    """
    Chid, Cin = w1_oihw.shape[0], w1_oihw.shape[1]
    Cout = w2_oihw.shape[0]
    w1mat = jnp.transpose(w1_oihw, (0, 2, 3, 1)).reshape(Chid, 9 * Cin)
    w2mat = jnp.transpose(w2_oihw, (0, 2, 3, 1)).reshape(Cout, 9 * Chid)
    return dict(
        w1mat=w1mat.astype(jnp.bfloat16),
        b1=b1.reshape(Chid, 1).astype(jnp.float32),
        w2mat=w2mat.astype(jnp.bfloat16),
        b2=b2.reshape(Cout, 1).astype(jnp.float32),
    )


def _images_per_step(n):
    """Largest divisor of n that is <= 4 while keeping >= 2 grid steps
    (keeps both v7x TensorCores busy); falls back to 1."""
    best = 1
    for bn in range(1, n + 1):
        if n % bn == 0 and bn <= 4 and n // bn >= 2:
            best = bn
    return best


def disp_head_pallas(x_nchw, params):
    """x_nchw: (N, Cin, H, W) f32. params: output of prepare_disp_head_params."""
    N, Cin, H, W = x_nchw.shape
    Chid = params["w1mat"].shape[0]
    Cout = params["w2mat"].shape[0]
    Wp = W + 2
    HWp = H * Wp
    L = (H + 2) * Wp + 2          # +2 overrun columns so every tap slice fits

    Bn = _images_per_step(N)
    # Contiguous reshape only (free).  Padding / flattening / bf16-cast happen
    # in-kernel, so x is read from HBM exactly once and never copied there.
    x_flat = x_nchw.reshape(N, Cin, H * W)

    kernel = functools.partial(_disp_head_kernel, H=H, W=W, Bn=Bn)

    out_flat = pl.pallas_call(
        kernel,
        out_shape=jax.ShapeDtypeStruct((N, Cout, HWp), jnp.float32),
        grid_spec=pltpu.PrefetchScalarGridSpec(
            num_scalar_prefetch=0,
            grid=(N // Bn,),
            in_specs=[
                pl.BlockSpec((Bn, Cin, H * W), lambda n: (n, 0, 0)),
                pl.BlockSpec((Chid, 9 * Cin), lambda n: (0, 0)),
                pl.BlockSpec((Chid, 1), lambda n: (0, 0)),
                pl.BlockSpec((Cout, 9 * Chid), lambda n: (0, 0)),
                pl.BlockSpec((Cout, 1), lambda n: (0, 0)),
            ],
            out_specs=pl.BlockSpec((Bn, Cout, HWp), lambda n: (n, 0, 0)),
            scratch_shapes=[
                pltpu.VMEM((Cin, L), jnp.bfloat16),        # padded input
                pltpu.VMEM((9 * Cin, HWp), jnp.bfloat16),  # conv1 im2col slab
                pltpu.VMEM((Chid, L), jnp.float32),        # padded hidden
            ],
        ),
        compiler_params=pltpu.CompilerParams(
            dimension_semantics=("parallel",),
            vmem_limit_bytes=32 * 1024 * 1024,
        ),
    )(x_flat, params["w1mat"], params["b1"], params["w2mat"], params["b2"])

    # Drop the 2 junk columns per padded row; output is already NCHW-ordered.
    return out_flat.reshape(N, Cout, H, Wp)[..., :W]


def disp_head_reference(x_nchw, w1_oihw, b1, w2_oihw, b2):
    """Pure-JAX f32 reference (lax.conv) matching nn.Conv2d semantics."""
    dn = lax.conv_dimension_numbers(x_nchw.shape, w1_oihw.shape,
                                    ("NCHW", "OIHW", "NCHW"))
    h = lax.conv_general_dilated(x_nchw, w1_oihw, (1, 1), ((1, 1), (1, 1)),
                                 dimension_numbers=dn,
                                 precision=lax.Precision.HIGHEST)
    h = jnp.maximum(h + b1.reshape(1, -1, 1, 1), 0.0)
    dn2 = lax.conv_dimension_numbers(h.shape, w2_oihw.shape,
                                     ("NCHW", "OIHW", "NCHW"))
    o = lax.conv_general_dilated(h, w2_oihw, (1, 1), ((1, 1), (1, 1)),
                                 dimension_numbers=dn2,
                                 precision=lax.Precision.HIGHEST)
    return o + b2.reshape(1, -1, 1, 1)


if __name__ == "__main__":
    # Small shapes consistent with DispHead(input_dim, hidden_dim, output_dim=1).
    Cin, Chid, Cout = 16, 32, 1
    H, W = 16, 16

    key = jax.random.PRNGKey(0)
    k_x, k_w1, k_b1, k_w2, k_b2, k_x4 = jax.random.split(key, 6)

    w1 = jax.random.normal(k_w1, (Chid, Cin, 3, 3), jnp.float32) * 0.05
    b1 = jax.random.normal(k_b1, (Chid,), jnp.float32) * 0.05
    w2 = jax.random.normal(k_w2, (Cout, Chid, 3, 3), jnp.float32) * 0.05
    b2 = jax.random.normal(k_b2, (Cout,), jnp.float32) * 0.05

    params = prepare_disp_head_params(w1, b1, w2, b2)   # one-time weight prep
    forward = jax.jit(disp_head_pallas)

    # N=2 -> 1 image per grid step (keeps 2 grid steps for the v7x cores).
    x = jax.random.normal(k_x, (2, Cin, H, W), jnp.float32)
    out = jax.block_until_ready(forward(x, params))
    ref = jax.block_until_ready(disp_head_reference(x, w1, b1, w2, b2))
    assert out.shape == (2, Cout, H, W), out.shape
    # Both convs use bf16 MXU operands (f32 accumulation) -> looser than f32.
    err = float(jnp.max(jnp.abs(out - ref)))
    assert jnp.allclose(out, ref, rtol=2e-2, atol=3e-2), err

    # N=4 -> 2 images per grid step (exercises the batched-per-step path).
    x4 = jax.random.normal(k_x4, (4, Cin, H, W), jnp.float32)
    out4 = jax.block_until_ready(forward(x4, params))
    ref4 = jax.block_until_ready(disp_head_reference(x4, w1, b1, w2, b2))
    assert out4.shape == (4, Cout, H, W), out4.shape
    err4 = float(jnp.max(jnp.abs(out4 - ref4)))
    assert jnp.allclose(out4, ref4, rtol=2e-2, atol=3e-2), err4

    print("KERNEL_OK")
</pallas_src>

<mosaic_0001>
module attributes {stable_mosaic.version = 11 : i64} {
  func.func @_disp_head_kernel(%arg0: i32, %arg1: memref<1x16x256xf32, #tpu.memory_space<vmem>>, %arg2: memref<32x144xbf16, #tpu.memory_space<vmem>>, %arg3: memref<32x1xf32, #tpu.memory_space<vmem>>, %arg4: memref<1x288xbf16, #tpu.memory_space<vmem>>, %arg5: memref<1x1xf32, #tpu.memory_space<vmem>>, %arg6: memref<1x1x288xf32, #tpu.memory_space<vmem>>, %arg7: memref<16x326xbf16, #tpu.memory_space<vmem>>, %arg8: memref<144x288xbf16, #tpu.memory_space<vmem>>, %arg9: memref<32x326xf32, #tpu.memory_space<vmem>>) attributes {dimension_semantics = [#tpu.dimension_semantics<parallel>], iteration_bounds = array<i64: 2>, scalar_prefetch = 0 : i64, scratch_operands = 3 : i64, tpu.core_type = #tpu.core_type<tc>, window_params = [{transform_indices = @transform_0, window_bounds = array<i64: 1, 16, 256>}, {pipeline_mode = #tpu.pipeline_mode<synchronous>, transform_indices = @transform_1, window_bounds = array<i64: 32, 144>}, {pipeline_mode = #tpu.pipeline_mode<synchronous>, transform_indices = @transform_2, window_bounds = array<i64: 32, 1>}, {pipeline_mode = #tpu.pipeline_mode<synchronous>, transform_indices = @transform_3, window_bounds = array<i64: 1, 288>}, {pipeline_mode = #tpu.pipeline_mode<synchronous>, transform_indices = @transform_4, window_bounds = array<i64: 1, 1>}, {transform_indices = @transform_5, window_bounds = array<i64: 1, 1, 288>}]} {
    %0 = tpu.iota {dimensions = array<i32: 1>} : vector<1x288xi32>
    %c18_i32 = arith.constant 18 : i32
    %c0_i32 = arith.constant 0 : i32
    %1 = arith.cmpi eq, %c18_i32, %c0_i32 : i32
    %c1_i32 = arith.constant 1 : i32
    %2 = arith.select %1, %c1_i32, %c18_i32 : i32
    %3 = vector.broadcast %2 : i32 to vector<1x288xi32>
    %4 = arith.remsi %0, %3 : vector<1x288xi32>
    %c0_i32_0 = arith.constant 0 : i32
    %5 = vector.broadcast %c0_i32_0 : i32 to vector<1x288xi32>
    %6 = arith.cmpi ne, %4, %5 : vector<1x288xi32>
    %c0_i32_1 = arith.constant 0 : i32
    %7 = vector.broadcast %c0_i32_1 : i32 to vector<1x288xi32>
    %8 = arith.cmpi slt, %4, %7 : vector<1x288xi32>
    %c0_i32_2 = arith.constant 0 : i32
    %9 = arith.cmpi slt, %2, %c0_i32_2 : i32
    %10 = vector.broadcast %9 : i1 to vector<1x288xi1>
    %11 = vector.broadcast %10 : vector<1x288xi1> to vector<1x288xi1>
    %12 = arith.xori %8, %11 : vector<1x288xi1>
    %13 = arith.andi %12, %6 : vector<1x288xi1>
    %14 = vector.broadcast %2 : i32 to vector<1x288xi32>
    %15 = arith.addi %4, %14 : vector<1x288xi32>
    %16 = arith.select %13, %15, %4 : vector<1x288xi1>, vector<1x288xi32>
    %c16_i32 = arith.constant 16 : i32
    %17 = vector.broadcast %c16_i32 : i32 to vector<1x288xi32>
    %18 = arith.cmpi slt, %16, %17 : vector<1x288xi32>
    %19 = arith.extui %18 : vector<1x288xi1> to vector<1x288xi32>
    %20 = arith.sitofp %19 : vector<1x288xi32> to vector<1x288xf32>
    %c0 = arith.constant 0 : index
    %c0_3 = arith.constant 0 : index
    %c0_4 = arith.constant 0 : index
    %21 = vector.load %arg1[%c0, %c0_3, %c0_4] : memref<1x16x256xf32, #tpu.memory_space<vmem>>, vector<1x16x16xf32>
    %22 = vector.shape_cast %21 : vector<1x16x16xf32> to vector<16x16xf32>
    %23 = arith.truncf %22 : vector<16x16xf32> to vector<16x16xbf16>
    %c0_5 = arith.constant 0 : index
    %c19 = arith.constant 19 : index
    %24 = vector.load %arg7[%c0_5, %c19] : memref<16x326xbf16, #tpu.memory_space<vmem>>, vector<16x16xbf16>
    tpu.vector_store %arg7[%c0_5, %c19], %23 {strides = array<i32>} : memref<16x326xbf16, #tpu.memory_space<vmem>>, vector<16x16xbf16>,
    %c0_6 = arith.constant 0 : index
    %c0_7 = arith.constant 0 : index
    %c16 = arith.constant 16 : index
    %25 = vector.load %arg1[%c0_6, %c0_7, %c16] : memref<1x16x256xf32, #tpu.memory_space<vmem>>, vector<1x16x16xf32>
    %26 = vector.shape_cast %25 : vector<1x16x16xf32> to vector<16x16xf32>
    %27 = arith.truncf %26 : vector<16x16xf32> to vector<16x16xbf16>
    %c0_8 = arith.constant 0 : index
    %c37 = arith.constant 37 : index
    %28 = vector.load %arg7[%c0_8, %c37] : memref<16x326xbf16, #tpu.memory_space<vmem>>, vector<16x16xbf16>
    tpu.vector_store %arg7[%c0_8, %c37], %27 {strides = array<i32>} : memref<16x326xbf16, #tpu.memory_space<vmem>>, vector<16x16xbf16>,
    %c0_9 = arith.constant 0 : index
    %c0_10 = arith.constant 0 : index
    %c32 = arith.constant 32 : index
    %29 = vector.load %arg1[%c0_9, %c0_10, %c32] : memref<1x16x256xf32, #tpu.memory_space<vmem>>, vector<1x16x16xf32>
    %30 = vector.shape_cast %29 : vector<1x16x16xf32> to vector<16x16xf32>
    %31 = arith.truncf %30 : vector<16x16xf32> to vector<16x16xbf16>
    %c0_11 = arith.constant 0 : index
    %c55 = arith.constant 55 : index
    %32 = vector.load %arg7[%c0_11, %c55] : memref<16x326xbf16, #tpu.memory_space<vmem>>, vector<16x16xbf16>
    tpu.vector_store %arg7[%c0_11, %c55], %31 {strides = array<i32>} : memref<16x326xbf16, #tpu.memory_space<vmem>>, vector<16x16xbf16>,
    %c0_12 = arith.constant 0 : index
    %c0_13 = arith.constant 0 : index
    %c48 = arith.constant 48 : index
    %33 = vector.load %arg1[%c0_12, %c0_13, %c48] : memref<1x16x256xf32, #tpu.memory_space<vmem>>, vector<1x16x16xf32>
    %34 = vector.shape_cast %33 : vector<1x16x16xf32> to vector<16x16xf32>
    %35 = arith.truncf %34 : vector<16x16xf32> to vector<16x16xbf16>
    %c0_14 = arith.constant 0 : index
    %c73 = arith.constant 73 : index
    %36 = vector.load %arg7[%c0_14, %c73] : memref<16x326xbf16, #tpu.memory_space<vmem>>, vector<16x16xbf16>
    tpu.vector_store %arg7[%c0_14, %c73], %35 {strides = array<i32>} : memref<16x326xbf16, #tpu.memory_space<vmem>>, vector<16x16xbf16>,
    %c0_15 = arith.constant 0 : index
    %c0_16 = arith.constant 0 : index
    %c64 = arith.constant 64 : index
    %37 = vector.load %arg1[%c0_15, %c0_16, %c64] : memref<1x16x256xf32, #tpu.memory_space<vmem>>, vector<1x16x16xf32>
    %38 = vector.shape_cast %37 : vector<1x16x16xf32> to vector<16x16xf32>
    %39 = arith.truncf %38 : vector<16x16xf32> to vector<16x16xbf16>
    %c0_17 = arith.constant 0 : index
    %c91 = arith.constant 91 : index
    %40 = vector.load %arg7[%c0_17, %c91] : memref<16x326xbf16, #tpu.memory_space<vmem>>, vector<16x16xbf16>
    tpu.vector_store %arg7[%c0_17, %c91], %39 {strides = array<i32>} : memref<16x326xbf16, #tpu.memory_space<vmem>>, vector<16x16xbf16>,
    %c0_18 = arith.constant 0 : index
    %c0_19 = arith.constant 0 : index
    %c80 = arith.constant 80 : index
    %41 = vector.load %arg1[%c0_18, %c0_19, %c80] : memref<1x16x256xf32, #tpu.memory_space<vmem>>, vector<1x16x16xf32>
    %42 = vector.shape_cast %41 : vector<1x16x16xf32> to vector<16x16xf32>
    %43 = arith.truncf %42 : vector<16x16xf32> to vector<16x16xbf16>
    %c0_20 = arith.constant 0 : index
    %c109 = arith.constant 109 : index
    %44 = vector.load %arg7[%c0_20, %c109] : memref<16x326xbf16, #tpu.memory_space<vmem>>, vector<16x16xbf16>
    tpu.vector_store %arg7[%c0_20, %c109], %43 {strides = array<i32>} : memref<16x326xbf16, #tpu.memory_space<vmem>>, vector<16x16xbf16>,
    %c0_21 = arith.constant 0 : index
    %c0_22 = arith.constant 0 : index
    %c96 = arith.constant 96 : index
    %45 = vector.load %arg1[%c0_21, %c0_22, %c96] : memref<1x16x256xf32, #tpu.memory_space<vmem>>, vector<1x16x16xf32>
    %46 = vector.shape_cast %45 : vector<1x16x16xf32> to vector<16x16xf32>
    %47 = arith.truncf %46 : vector<16x16xf32> to vector<16x16xbf16>
    %c0_23 = arith.constant 0 : index
    %c127 = arith.constant 127 : index
    %48 = vector.load %arg7[%c0_23, %c127] : memref<16x326xbf16, #tpu.memory_space<vmem>>, vector<16x16xbf16>
    tpu.vector_store %arg7[%c0_23, %c127], %47 {strides = array<i32>} : memref<16x326xbf16, #tpu.memory_space<vmem>>, vector<16x16xbf16>,
    %c0_24 = arith.constant 0 : index
    %c0_25 = arith.constant 0 : index
    %c112 = arith.constant 112 : index
    %49 = vector.load %arg1[%c0_24, %c0_25, %c112] : memref<1x16x256xf32, #tpu.memory_space<vmem>>, vector<1x16x16xf32>
    %50 = vector.shape_cast %49 : vector<1x16x16xf32> to vector<16x16xf32>
    %51 = arith.truncf %50 : vector<16x16xf32> to vector<16x16xbf16>
    %c0_26 = arith.constant 0 : index
    %c145 = arith.constant 145 : index
    %52 = vector.load %arg7[%c0_26, %c145] : memref<16x326xbf16, #tpu.memory_space<vmem>>, vector<16x16xbf16>
    tpu.vector_store %arg7[%c0_26, %c145], %51 {strides = array<i32>} : memref<16x326xbf16, #tpu.memory_space<vmem>>, vector<16x16xbf16>,
    %c0_27 = arith.constant 0 : index
    %c0_28 = arith.constant 0 : index
    %c128 = arith.constant 128 : index
    %53 = vector.load %arg1[%c0_27, %c0_28, %c128] : memref<1x16x256xf32, #tpu.memory_space<vmem>>, vector<1x16x16xf32>
    %54 = vector.shape_cast %53 : vector<1x16x16xf32> to vector<16x16xf32>
    %55 = arith.truncf %54 : vector<16x16xf32> to vector<16x16xbf16>
    %c0_29 = arith.constant 0 : index
    %c163 = arith.constant 163 : index
    %56 = vector.load %arg7[%c0_29, %c163] : memref<16x326xbf16, #tpu.memory_space<vmem>>, vector<16x16xbf16>
    tpu.vector_store %arg7[%c0_29, %c163], %55 {strides = array<i32>} : memref<16x326xbf16, #tpu.memory_space<vmem>>, vector<16x16xbf16>,
    %c0_30 = arith.constant 0 : index
    %c0_31 = arith.constant 0 : index
    %c144 = arith.constant 144 : index
    %57 = vector.load %arg1[%c0_30, %c0_31, %c144] : memref<1x16x256xf32, #tpu.memory_space<vmem>>, vector<1x16x16xf32>
    %58 = vector.shape_cast %57 : vector<1x16x16xf32> to vector<16x16xf32>
    %59 = arith.truncf %58 : vector<16x16xf32> to vector<16x16xbf16>
    %c0_32 = arith.constant 0 : index
    %c181 = arith.constant 181 : index
    %60 = vector.load %arg7[%c0_32, %c181] : memref<16x326xbf16, #tpu.memory_space<vmem>>, vector<16x16xbf16>
    tpu.vector_store %arg7[%c0_32, %c181], %59 {strides = array<i32>} : memref<16x326xbf16, #tpu.memory_space<vmem>>, vector<16x16xbf16>,
    %c0_33 = arith.constant 0 : index
    %c0_34 = arith.constant 0 : index
    %c160 = arith.constant 160 : index
    %61 = vector.load %arg1[%c0_33, %c0_34, %c160] : memref<1x16x256xf32, #tpu.memory_space<vmem>>, vector<1x16x16xf32>
    %62 = vector.shape_cast %61 : vector<1x16x16xf32> to vector<16x16xf32>
    %63 = arith.truncf %62 : vector<16x16xf32> to vector<16x16xbf16>
    %c0_35 = arith.constant 0 : index
    %c199 = arith.constant 199 : index
    %64 = vector.load %arg7[%c0_35, %c199] : memref<16x326xbf16, #tpu.memory_space<vmem>>, vector<16x16xbf16>
    tpu.vector_store %arg7[%c0_35, %c199], %63 {strides = array<i32>} : memref<16x326xbf16, #tpu.memory_space<vmem>>, vector<16x16xbf16>,
    %c0_36 = arith.constant 0 : index
    %c0_37 = arith.constant 0 : index
    %c176 = arith.constant 176 : index
    %65 = vector.load %arg1[%c0_36, %c0_37, %c176] : memref<1x16x256xf32, #tpu.memory_space<vmem>>, vector<1x16x16xf32>
    %66 = vector.shape_cast %65 : vector<1x16x16xf32> to vector<16x16xf32>
    %67 = arith.truncf %66 : vector<16x16xf32> to vector<16x16xbf16>
    %c0_38 = arith.constant 0 : index
    %c217 = arith.constant 217 : index
    %68 = vector.load %arg7[%c0_38, %c217] : memref<16x326xbf16, #tpu.memory_space<vmem>>, vector<16x16xbf16>
    tpu.vector_store %arg7[%c0_38, %c217], %67 {strides = array<i32>} : memref<16x326xbf16, #tpu.memory_space<vmem>>, vector<16x16xbf16>,
    %c0_39 = arith.constant 0 : index
    %c0_40 = arith.constant 0 : index
    %c192 = arith.constant 192 : index
    %69 = vector.load %arg1[%c0_39, %c0_40, %c192] : memref<1x16x256xf32, #tpu.memory_space<vmem>>, vector<1x16x16xf32>
    %70 = vector.shape_cast %69 : vector<1x16x16xf32> to vector<16x16xf32>
    %71 = arith.truncf %70 : vector<16x16xf32> to vector<16x16xbf16>
    %c0_41 = arith.constant 0 : index
    %c235 = arith.constant 235 : index
    %72 = vector.load %arg7[%c0_41, %c235] : memref<16x326xbf16, #tpu.memory_space<vmem>>, vector<16x16xbf16>
    tpu.vector_store %arg7[%c0_41, %c235], %71 {strides = array<i32>} : memref<16x326xbf16, #tpu.memory_space<vmem>>, vector<16x16xbf16>,
    %c0_42 = arith.constant 0 : index
    %c0_43 = arith.constant 0 : index
    %c208 = arith.constant 208 : index
    %73 = vector.load %arg1[%c0_42, %c0_43, %c208] : memref<1x16x256xf32, #tpu.memory_space<vmem>>, vector<1x16x16xf32>
    %74 = vector.shape_cast %73 : vector<1x16x16xf32> to vector<16x16xf32>
    %75 = arith.truncf %74 : vector<16x16xf32> to vector<16x16xbf16>
    %c0_44 = arith.constant 0 : index
    %c253 = arith.constant 253 : index
    %76 = vector.load %arg7[%c0_44, %c253] : memref<16x326xbf16, #tpu.memory_space<vmem>>, vector<16x16xbf16>
    tpu.vector_store %arg7[%c0_44, %c253], %75 {strides = array<i32>} : memref<16x326xbf16, #tpu.memory_space<vmem>>, vector<16x16xbf16>,
    %c0_45 = arith.constant 0 : index
    %c0_46 = arith.constant 0 : index
    %c224 = arith.constant 224 : index
    %77 = vector.load %arg1[%c0_45, %c0_46, %c224] : memref<1x16x256xf32, #tpu.memory_space<vmem>>, vector<1x16x16xf32>
    %78 = vector.shape_cast %77 : vector<1x16x16xf32> to vector<16x16xf32>
    %79 = arith.truncf %78 : vector<16x16xf32> to vector<16x16xbf16>
    %c0_47 = arith.constant 0 : index
    %c271 = arith.constant 271 : index
    %80 = vector.load %arg7[%c0_47, %c271] : memref<16x326xbf16, #tpu.memory_space<vmem>>, vector<16x16xbf16>
    tpu.vector_store %arg7[%c0_47, %c271], %79 {strides = array<i32>} : memref<16x326xbf16, #tpu.memory_space<vmem>>, vector<16x16xbf16>,
    %c0_48 = arith.constant 0 : index
    %c0_49 = arith.constant 0 : index
    %c240 = arith.constant 240 : index
    %81 = vector.load %arg1[%c0_48, %c0_49, %c240] : memref<1x16x256xf32, #tpu.memory_space<vmem>>, vector<1x16x16xf32>
    %82 = vector.shape_cast %81 : vector<1x16x16xf32> to vector<16x16xf32>
    %83 = arith.truncf %82 : vector<16x16xf32> to vector<16x16xbf16>
    %c0_50 = arith.constant 0 : index
    %c289 = arith.constant 289 : index
    %84 = vector.load %arg7[%c0_50, %c289] : memref<16x326xbf16, #tpu.memory_space<vmem>>, vector<16x16xbf16>
    tpu.vector_store %arg7[%c0_50, %c289], %83 {strides = array<i32>} : memref<16x326xbf16, #tpu.memory_space<vmem>>, vector<16x16xbf16>,
    %cst = arith.constant 0.000000e+00 : bf16
    %85 = vector.broadcast %cst : bf16 to vector<16x19xbf16>
    %c0_51 = arith.constant 0 : index
    %c0_52 = arith.constant 0 : index
    %86 = vector.load %arg7[%c0_51, %c0_52] : memref<16x326xbf16, #tpu.memory_space<vmem>>, vector<16x19xbf16>
    tpu.vector_store %arg7[%c0_51, %c0_52], %85 {strides = array<i32>} : memref<16x326xbf16, #tpu.memory_space<vmem>>, vector<16x19xbf16>,
    %cst_53 = arith.constant 0.000000e+00 : bf16
    %87 = vector.broadcast %cst_53 : bf16 to vector<16x2xbf16>
    %c0_54 = arith.constant 0 : index
    %c35 = arith.constant 35 : index
    %88 = vector.load %arg7[%c0_54, %c35] : memref<16x326xbf16, #tpu.memory_space<vmem>>, vector<16x2xbf16>
    tpu.vector_store %arg7[%c0_54, %c35], %87 {strides = array<i32>} : memref<16x326xbf16, #tpu.memory_space<vmem>>, vector<16x2xbf16>,
    %cst_55 = arith.constant 0.000000e+00 : bf16
    %89 = vector.broadcast %cst_55 : bf16 to vector<16x2xbf16>
    %c0_56 = arith.constant 0 : index
    %c53 = arith.constant 53 : index
    %90 = vector.load %arg7[%c0_56, %c53] : memref<16x326xbf16, #tpu.memory_space<vmem>>, vector<16x2xbf16>
    tpu.vector_store %arg7[%c0_56, %c53], %89 {strides = array<i32>} : memref<16x326xbf16, #tpu.memory_space<vmem>>, vector<16x2xbf16>,
    %cst_57 = arith.constant 0.000000e+00 : bf16
    %91 = vector.broadcast %cst_57 : bf16 to vector<16x2xbf16>
    %c0_58 = arith.constant 0 : index
    %c71 = arith.constant 71 : index
    %92 = vector.load %arg7[%c0_58, %c71] : memref<16x326xbf16, #tpu.memory_space<vmem>>, vector<16x2xbf16>
    tpu.vector_store %arg7[%c0_58, %c71], %91 {strides = array<i32>} : memref<16x326xbf16, #tpu.memory_space<vmem>>, vector<16x2xbf16>,
    %cst_59 = arith.constant 0.000000e+00 : bf16
    %93 = vector.broadcast %cst_59 : bf16 to vector<16x2xbf16>
    %c0_60 = arith.constant 0 : index
    %c89 = arith.constant 89 : index
    %94 = vector.load %arg7[%c0_60, %c89] : memref<16x326xbf16, #tpu.memory_space<vmem>>, vector<16x2xbf16>
    tpu.vector_store %arg7[%c0_60, %c89], %93 {strides = array<i32>} : memref<16x326xbf16, #tpu.memory_space<vmem>>, vector<16x2xbf16>,
    %cst_61 = arith.constant 0.000000e+00 : bf16
    %95 = vector.broadcast %cst_61 : bf16 to vector<16x2xbf16>
    %c0_62 = arith.constant 0 : index
    %c107 = arith.constant 107 : index
    %96 = vector.load %arg7[%c0_62, %c107] : memref<16x326xbf16, #tpu.memory_space<vmem>>, vector<16x2xbf16>
    tpu.vector_store %arg7[%c0_62, %c107], %95 {strides = array<i32>} : memref<16x326xbf16, #tpu.memory_space<vmem>>, vector<16x2xbf16>,
    %cst_63 = arith.constant 0.000000e+00 : bf16
    %97 = vector.broadcast %cst_63 : bf16 to vector<16x2xbf16>
    %c0_64 = arith.constant 0 : index
    %c125 = arith.constant 125 : index
    %98 = vector.load %arg7[%c0_64, %c125] : memref<16x326xbf16, #tpu.memory_space<vmem>>, vector<16x2xbf16>
    tpu.vector_store %arg7[%c0_64, %c125], %97 {strides = array<i32>} : memref<16x326xbf16, #tpu.memory_space<vmem>>, vector<16x2xbf16>,
    %cst_65 = arith.constant 0.000000e+00 : bf16
    %99 = vector.broadcast %cst_65 : bf16 to vector<16x2xbf16>
    %c0_66 = arith.constant 0 : index
    %c143 = arith.constant 143 : index
    %100 = vector.load %arg7[%c0_66, %c143] : memref<16x326xbf16, #tpu.memory_space<vmem>>, vector<16x2xbf16>
    tpu.vector_store %arg7[%c0_66, %c143], %99 {strides = array<i32>} : memref<16x326xbf16, #tpu.memory_space<vmem>>, vector<16x2xbf16>,
    %cst_67 = arith.constant 0.000000e+00 : bf16
    %101 = vector.broadcast %cst_67 : bf16 to vector<16x2xbf16>
    %c0_68 = arith.constant 0 : index
    %c161 = arith.constant 161 : index
    %102 = vector.load %arg7[%c0_68, %c161] : memref<16x326xbf16, #tpu.memory_space<vmem>>, vector<16x2xbf16>
    tpu.vector_store %arg7[%c0_68, %c161], %101 {strides = array<i32>} : memref<16x326xbf16, #tpu.memory_space<vmem>>, vector<16x2xbf16>,
    %cst_69 = arith.constant 0.000000e+00 : bf16
    %103 = vector.broadcast %cst_69 : bf16 to vector<16x2xbf16>
    %c0_70 = arith.constant 0 : index
    %c179 = arith.constant 179 : index
    %104 = vector.load %arg7[%c0_70, %c179] : memref<16x326xbf16, #tpu.memory_space<vmem>>, vector<16x2xbf16>
    tpu.vector_store %arg7[%c0_70, %c179], %103 {strides = array<i32>} : memref<16x326xbf16, #tpu.memory_space<vmem>>, vector<16x2xbf16>,
    %cst_71 = arith.constant 0.000000e+00 : bf16
    %105 = vector.broadcast %cst_71 : bf16 to vector<16x2xbf16>
    %c0_72 = arith.constant 0 : index
    %c197 = arith.constant 197 : index
    %106 = vector.load %arg7[%c0_72, %c197] : memref<16x326xbf16, #tpu.memory_space<vmem>>, vector<16x2xbf16>
    tpu.vector_store %arg7[%c0_72, %c197], %105 {strides = array<i32>} : memref<16x326xbf16, #tpu.memory_space<vmem>>, vector<16x2xbf16>,
    %cst_73 = arith.constant 0.000000e+00 : bf16
    %107 = vector.broadcast %cst_73 : bf16 to vector<16x2xbf16>
    %c0_74 = arith.constant 0 : index
    %c215 = arith.constant 215 : index
    %108 = vector.load %arg7[%c0_74, %c215] : memref<16x326xbf16, #tpu.memory_space<vmem>>, vector<16x2xbf16>
    tpu.vector_store %arg7[%c0_74, %c215], %107 {strides = array<i32>} : memref<16x326xbf16, #tpu.memory_space<vmem>>, vector<16x2xbf16>,
    %cst_75 = arith.constant 0.000000e+00 : bf16
    %109 = vector.broadcast %cst_75 : bf16 to vector<16x2xbf16>
    %c0_76 = arith.constant 0 : index
    %c233 = arith.constant 233 : index
    %110 = vector.load %arg7[%c0_76, %c233] : memref<16x326xbf16, #tpu.memory_space<vmem>>, vector<16x2xbf16>
    tpu.vector_store %arg7[%c0_76, %c233], %109 {strides = array<i32>} : memref<16x326xbf16, #tpu.memory_space<vmem>>, vector<16x2xbf16>,
    %cst_77 = arith.constant 0.000000e+00 : bf16
    %111 = vector.broadcast %cst_77 : bf16 to vector<16x2xbf16>
    %c0_78 = arith.constant 0 : index
    %c251 = arith.constant 251 : index
    %112 = vector.load %arg7[%c0_78, %c251] : memref<16x326xbf16, #tpu.memory_space<vmem>>, vector<16x2xbf16>
    tpu.vector_store %arg7[%c0_78, %c251], %111 {strides = array<i32>} : memref<16x326xbf16, #tpu.memory_space<vmem>>, vector<16x2xbf16>,
    %cst_79 = arith.constant 0.000000e+00 : bf16
    %113 = vector.broadcast %cst_79 : bf16 to vector<16x2xbf16>
    %c0_80 = arith.constant 0 : index
    %c269 = arith.constant 269 : index
    %114 = vector.load %arg7[%c0_80, %c269] : memref<16x326xbf16, #tpu.memory_space<vmem>>, vector<16x2xbf16>
    tpu.vector_store %arg7[%c0_80, %c269], %113 {strides = array<i32>} : memref<16x326xbf16, #tpu.memory_space<vmem>>, vector<16x2xbf16>,
    %cst_81 = arith.constant 0.000000e+00 : bf16
    %115 = vector.broadcast %cst_81 : bf16 to vector<16x2xbf16>
    %c0_82 = arith.constant 0 : index
    %c287 = arith.constant 287 : index
    %116 = vector.load %arg7[%c0_82, %c287] : memref<16x326xbf16, #tpu.memory_space<vmem>>, vector<16x2xbf16>
    tpu.vector_store %arg7[%c0_82, %c287], %115 {strides = array<i32>} : memref<16x326xbf16, #tpu.memory_space<vmem>>, vector<16x2xbf16>,
    %cst_83 = arith.constant 0.000000e+00 : bf16
    %117 = vector.broadcast %cst_83 : bf16 to vector<16x21xbf16>
    %c0_84 = arith.constant 0 : index
    %c305 = arith.constant 305 : index
    %118 = vector.load %arg7[%c0_84, %c305] : memref<16x326xbf16, #tpu.memory_space<vmem>>, vector<16x21xbf16>
    tpu.vector_store %arg7[%c0_84, %c305], %117 {strides = array<i32>} : memref<16x326xbf16, #tpu.memory_space<vmem>>, vector<16x21xbf16>,
    %c0_85 = arith.constant 0 : index
    %c0_86 = arith.constant 0 : index
    %119 = vector.load %arg7[%c0_85, %c0_86] : memref<16x326xbf16, #tpu.memory_space<vmem>>, vector<16x288xbf16>
    %c0_87 = arith.constant 0 : index
    %c0_88 = arith.constant 0 : index
    %120 = vector.load %arg8[%c0_87, %c0_88] : memref<144x288xbf16, #tpu.memory_space<vmem>>, vector<16x288xbf16>
    tpu.vector_store %arg8[%c0_87, %c0_88], %119 {strides = array<i32>} : memref<144x288xbf16, #tpu.memory_space<vmem>>, vector<16x288xbf16>,
    %c0_89 = arith.constant 0 : index
    %c1 = arith.constant 1 : index
    %121 = vector.load %arg7[%c0_89, %c1] : memref<16x326xbf16, #tpu.memory_space<vmem>>, vector<16x288xbf16>
    %c16_90 = arith.constant 16 : index
    %c0_91 = arith.constant 0 : index
    %122 = vector.load %arg8[%c16_90, %c0_91] : memref<144x288xbf16, #tpu.memory_space<vmem>>, vector<16x288xbf16>
    tpu.vector_store %arg8[%c16_90, %c0_91], %121 {strides = array<i32>} : memref<144x288xbf16, #tpu.memory_space<vmem>>, vector<16x288xbf16>,
    %c0_92 = arith.constant 0 : index
    %c2 = arith.constant 2 : index
    %123 = vector.load %arg7[%c0_92, %c2] : memref<16x326xbf16, #tpu.memory_space<vmem>>, vector<16x288xbf16>
    %c32_93 = arith.constant 32 : index
    %c0_94 = arith.constant 0 : index
    %124 = vector.load %arg8[%c32_93, %c0_94] : memref<144x288xbf16, #tpu.memory_space<vmem>>, vector<16x288xbf16>
    tpu.vector_store %arg8[%c32_93, %c0_94], %123 {strides = array<i32>} : memref<144x288xbf16, #tpu.memory_space<vmem>>, vector<16x288xbf16>,
    %c0_95 = arith.constant 0 : index
    %c18 = arith.constant 18 : index
    %125 = vector.load %arg7[%c0_95, %c18] : memref<16x326xbf16, #tpu.memory_space<vmem>>, vector<16x288xbf16>
    %c48_96 = arith.constant 48 : index
    %c0_97 = arith.constant 0 : index
    %126 = vector.load %arg8[%c48_96, %c0_97] : memref<144x288xbf16, #tpu.memory_space<vmem>>, vector<16x288xbf16>
    tpu.vector_store %arg8[%c48_96, %c0_97], %125 {strides = array<i32>} : memref<144x288xbf16, #tpu.memory_space<vmem>>, vector<16x288xbf16>,
    %c0_98 = arith.constant 0 : index
    %c19_99 = arith.constant 19 : index
    %127 = vector.load %arg7[%c0_98, %c19_99] : memref<16x326xbf16, #tpu.memory_space<vmem>>, vector<16x288xbf16>
    %c64_100 = arith.constant 64 : index
    %c0_101 = arith.constant 0 : index
    %128 = vector.load %arg8[%c64_100, %c0_101] : memref<144x288xbf16, #tpu.memory_space<vmem>>, vector<16x288xbf16>
    tpu.vector_store %arg8[%c64_100, %c0_101], %127 {strides = array<i32>} : memref<144x288xbf16, #tpu.memory_space<vmem>>, vector<16x288xbf16>,
    %c0_102 = arith.constant 0 : index
    %c20 = arith.constant 20 : index
    %129 = vector.load %arg7[%c0_102, %c20] : memref<16x326xbf16, #tpu.memory_space<vmem>>, vector<16x288xbf16>
    %c80_103 = arith.constant 80 : index
    %c0_104 = arith.constant 0 : index
    %130 = vector.load %arg8[%c80_103, %c0_104] : memref<144x288xbf16, #tpu.memory_space<vmem>>, vector<16x288xbf16>
    tpu.vector_store %arg8[%c80_103, %c0_104], %129 {strides = array<i32>} : memref<144x288xbf16, #tpu.memory_space<vmem>>, vector<16x288xbf16>,
    %c0_105 = arith.constant 0 : index
    %c36 = arith.constant 36 : index
    %131 = vector.load %arg7[%c0_105, %c36] : memref<16x326xbf16, #tpu.memory_space<vmem>>, vector<16x288xbf16>
    %c96_106 = arith.constant 96 : index
    %c0_107 = arith.constant 0 : index
    %132 = vector.load %arg8[%c96_106, %c0_107] : memref<144x288xbf16, #tpu.memory_space<vmem>>, vector<16x288xbf16>
    tpu.vector_store %arg8[%c96_106, %c0_107], %131 {strides = array<i32>} : memref<144x288xbf16, #tpu.memory_space<vmem>>, vector<16x288xbf16>,
    %c0_108 = arith.constant 0 : index
    %c37_109 = arith.constant 37 : index
    %133 = vector.load %arg7[%c0_108, %c37_109] : memref<16x326xbf16, #tpu.memory_space<vmem>>, vector<16x288xbf16>
    %c112_110 = arith.constant 112 : index
    %c0_111 = arith.constant 0 : index
    %134 = vector.load %arg8[%c112_110, %c0_111] : memref<144x288xbf16, #tpu.memory_space<vmem>>, vector<16x288xbf16>
    tpu.vector_store %arg8[%c112_110, %c0_111], %133 {strides = array<i32>} : memref<144x288xbf16, #tpu.memory_space<vmem>>, vector<16x288xbf16>,
    %c0_112 = arith.constant 0 : index
    %c38 = arith.constant 38 : index
    %135 = vector.load %arg7[%c0_112, %c38] : memref<16x326xbf16, #tpu.memory_space<vmem>>, vector<16x288xbf16>
    %c128_113 = arith.constant 128 : index
    %c0_114 = arith.constant 0 : index
    %136 = vector.load %arg8[%c128_113, %c0_114] : memref<144x288xbf16, #tpu.memory_space<vmem>>, vector<16x288xbf16>
    tpu.vector_store %arg8[%c128_113, %c0_114], %135 {strides = array<i32>} : memref<144x288xbf16, #tpu.memory_space<vmem>>, vector<16x288xbf16>,
    %c0_115 = arith.constant 0 : index
    %c0_116 = arith.constant 0 : index
    %137 = vector.load %arg2[%c0_115, %c0_116] : memref<32x144xbf16, #tpu.memory_space<vmem>>, vector<32x144xbf16>
    %c0_117 = arith.constant 0 : index
    %c0_118 = arith.constant 0 : index
    %138 = vector.load %arg8[%c0_117, %c0_118] : memref<144x288xbf16, #tpu.memory_space<vmem>>, vector<144x288xbf16>
    %cst_119 = arith.constant dense<0.000000e+00> : vector<32x288xf32>
    %139 = tpu.matmul %137, %138, %cst_119 {dimension_numbers = #tpu.dot_dimension_numbers<[1], [0], [0], [1], [0, 0, 1, 1], [], []>} : vector<32x144xbf16>, vector<144x288xbf16>, vector<32x288xf32> -> vector<32x288xf32>
    %c0_120 = arith.constant 0 : index
    %c0_121 = arith.constant 0 : index
    %140 = vector.load %arg3[%c0_120, %c0_121] : memref<32x1xf32, #tpu.memory_space<vmem>>, vector<32x1xf32>
    %141 = vector.broadcast %140 : vector<32x1xf32> to vector<32x288xf32>
    %142 = arith.addf %139, %141 : vector<32x288xf32>
    %cst_122 = arith.constant 0.000000e+00 : f32
    %143 = vector.broadcast %cst_122 : f32 to vector<32x288xf32>
    %144 = arith.maximumf %142, %143 : vector<32x288xf32>
    %145 = vector.broadcast %20 : vector<1x288xf32> to vector<32x288xf32>
    %146 = arith.mulf %144, %145 : vector<32x288xf32>
    %c0_123 = arith.constant 0 : index
    %c19_124 = arith.constant 19 : index
    %147 = vector.load %arg9[%c0_123, %c19_124] : memref<32x326xf32, #tpu.memory_space<vmem>>, vector<32x288xf32>
    tpu.vector_store %arg9[%c0_123, %c19_124], %146 {strides = array<i32>} : memref<32x326xf32, #tpu.memory_space<vmem>>, vector<32x288xf32>,
    %cst_125 = arith.constant 0.000000e+00 : f32
    %148 = vector.broadcast %cst_125 : f32 to vector<32x19xf32>
    %c0_126 = arith.constant 0 : index
    %c0_127 = arith.constant 0 : index
    %149 = vector.load %arg9[%c0_126, %c0_127] : memref<32x326xf32, #tpu.memory_space<vmem>>, vector<32x19xf32>
    tpu.vector_store %arg9[%c0_126, %c0_127], %148 {strides = array<i32>} : memref<32x326xf32, #tpu.memory_space<vmem>>, vector<32x19xf32>,
    %cst_128 = arith.constant 0.000000e+00 : f32
    %150 = vector.broadcast %cst_128 : f32 to vector<32x20xf32>
    %c0_129 = arith.constant 0 : index
    %c306 = arith.constant 306 : index
    %151 = vector.load %arg9[%c0_129, %c306] : memref<32x326xf32, #tpu.memory_space<vmem>>, vector<32x20xf32>
    tpu.vector_store %arg9[%c0_129, %c306], %150 {strides = array<i32>} : memref<32x326xf32, #tpu.memory_space<vmem>>, vector<32x20xf32>,
    %cst_130 = arith.constant 0.000000e+00 : f32
    %152 = vector.broadcast %cst_130 : f32 to vector<1x288xf32>
    %c0_131 = arith.constant 0 : index
    %c0_132 = arith.constant 0 : index
    %153 = vector.load %arg9[%c0_131, %c0_132] : memref<32x326xf32, #tpu.memory_space<vmem>>, vector<32x288xf32>
    %154 = arith.truncf %153 : vector<32x288xf32> to vector<32x288xbf16>
    %c0_133 = arith.constant 0 : index
    %c0_134 = arith.constant 0 : index
    %155 = vector.load %arg4[%c0_133, %c0_134] : memref<1x288xbf16, #tpu.memory_space<vmem>>, vector<1x32xbf16>
    %cst_135 = arith.constant dense<0.000000e+00> : vector<1x288xf32>
    %156 = tpu.matmul %155, %154, %cst_135 {dimension_numbers = #tpu.dot_dimension_numbers<[1], [0], [0], [1], [0, 0, 1, 1], [], []>} : vector<1x32xbf16>, vector<32x288xbf16>, vector<1x288xf32> -> vector<1x288xf32>
    %157 = arith.addf %152, %156 : vector<1x288xf32>
    %c0_136 = arith.constant 0 : index
    %c1_137 = arith.constant 1 : index
    %158 = vector.load %arg9[%c0_136, %c1_137] : memref<32x326xf32, #tpu.memory_space<vmem>>, vector<32x288xf32>
    %159 = arith.truncf %158 : vector<32x288xf32> to vector<32x288xbf16>
    %c0_138 = arith.constant 0 : index
    %c32_139 = arith.constant 32 : index
    %160 = vector.load %arg4[%c0_138, %c32_139] : memref<1x288xbf16, #tpu.memory_space<vmem>>, vector<1x32xbf16>
    %cst_140 = arith.constant dense<0.000000e+00> : vector<1x288xf32>
    %161 = tpu.matmul %160, %159, %cst_140 {dimension_numbers = #tpu.dot_dimension_numbers<[1], [0], [0], [1], [0, 0, 1, 1], [], []>} : vector<1x32xbf16>, vector<32x288xbf16>, vector<1x288xf32> -> vector<1x288xf32>
    %162 = arith.addf %157, %161 : vector<1x288xf32>
    %c0_141 = arith.constant 0 : index
    %c2_142 = arith.constant 2 : index
    %163 = vector.load %arg9[%c0_141, %c2_142] : memref<32x326xf32, #tpu.memory_space<vmem>>, vector<32x288xf32>
    %164 = arith.truncf %163 : vector<32x288xf32> to vector<32x288xbf16>
    %c0_143 = arith.constant 0 : index
    %c64_144 = arith.constant 64 : index
    %165 = vector.load %arg4[%c0_143, %c64_144] : memref<1x288xbf16, #tpu.memory_space<vmem>>, vector<1x32xbf16>
    %cst_145 = arith.constant dense<0.000000e+00> : vector<1x288xf32>
    %166 = tpu.matmul %165, %164, %cst_145 {dimension_numbers = #tpu.dot_dimension_numbers<[1], [0], [0], [1], [0, 0, 1, 1], [], []>} : vector<1x32xbf16>, vector<32x288xbf16>, vector<1x288xf32> -> vector<1x288xf32>
    %167 = arith.addf %162, %166 : vector<1x288xf32>
    %c0_146 = arith.constant 0 : index
    %c18_147 = arith.constant 18 : index
    %168 = vector.load %arg9[%c0_146, %c18_147] : memref<32x326xf32, #tpu.memory_space<vmem>>, vector<32x288xf32>
    %169 = arith.truncf %168 : vector<32x288xf32> to vector<32x288xbf16>
    %c0_148 = arith.constant 0 : index
    %c96_149 = arith.constant 96 : index
    %170 = vector.load %arg4[%c0_148, %c96_149] : memref<1x288xbf16, #tpu.memory_space<vmem>>, vector<1x32xbf16>
    %cst_150 = arith.constant dense<0.000000e+00> : vector<1x288xf32>
    %171 = tpu.matmul %170, %169, %cst_150 {dimension_numbers = #tpu.dot_dimension_numbers<[1], [0], [0], [1], [0, 0, 1, 1], [], []>} : vector<1x32xbf16>, vector<32x288xbf16>, vector<1x288xf32> -> vector<1x288xf32>
    %172 = arith.addf %167, %171 : vector<1x288xf32>
    %c0_151 = arith.constant 0 : index
    %c19_152 = arith.constant 19 : index
    %173 = vector.load %arg9[%c0_151, %c19_152] : memref<32x326xf32, #tpu.memory_space<vmem>>, vector<32x288xf32>
    %174 = arith.truncf %173 : vector<32x288xf32> to vector<32x288xbf16>
    %c0_153 = arith.constant 0 : index
    %c128_154 = arith.constant 128 : index
    %175 = vector.load %arg4[%c0_153, %c128_154] : memref<1x288xbf16, #tpu.memory_space<vmem>>, vector<1x32xbf16>
    %cst_155 = arith.constant dense<0.000000e+00> : vector<1x288xf32>
    %176 = tpu.matmul %175, %174, %cst_155 {dimension_numbers = #tpu.dot_dimension_numbers<[1], [0], [0], [1], [0, 0, 1, 1], [], []>} : vector<1x32xbf16>, vector<32x288xbf16>, vector<1x288xf32> -> vector<1x288xf32>
    %177 = arith.addf %172, %176 : vector<1x288xf32>
    %c0_156 = arith.constant 0 : index
    %c20_157 = arith.constant 20 : index
    %178 = vector.load %arg9[%c0_156, %c20_157] : memref<32x326xf32, #tpu.memory_space<vmem>>, vector<32x288xf32>
    %179 = arith.truncf %178 : vector<32x288xf32> to vector<32x288xbf16>
    %c0_158 = arith.constant 0 : index
    %c160_159 = arith.constant 160 : index
    %180 = vector.load %arg4[%c0_158, %c160_159] : memref<1x288xbf16, #tpu.memory_space<vmem>>, vector<1x32xbf16>
    %cst_160 = arith.constant dense<0.000000e+00> : vector<1x288xf32>
    %181 = tpu.matmul %180, %179, %cst_160 {dimension_numbers = #tpu.dot_dimension_numbers<[1], [0], [0], [1], [0, 0, 1, 1], [], []>} : vector<1x32xbf16>, vector<32x288xbf16>, vector<1x288xf32> -> vector<1x288xf32>
    %182 = arith.addf %177, %181 : vector<1x288xf32>
    %c0_161 = arith.constant 0 : index
    %c36_162 = arith.constant 36 : index
    %183 = vector.load %arg9[%c0_161, %c36_162] : memref<32x326xf32, #tpu.memory_space<vmem>>, vector<32x288xf32>
    %184 = arith.truncf %183 : vector<32x288xf32> to vector<32x288xbf16>
    %c0_163 = arith.constant 0 : index
    %c192_164 = arith.constant 192 : index
    %185 = vector.load %arg4[%c0_163, %c192_164] : memref<1x288xbf16, #tpu.memory_space<vmem>>, vector<1x32xbf16>
    %cst_165 = arith.constant dense<0.000000e+00> : vector<1x288xf32>
    %186 = tpu.matmul %185, %184, %cst_165 {dimension_numbers = #tpu.dot_dimension_numbers<[1], [0], [0], [1], [0, 0, 1, 1], [], []>} : vector<1x32xbf16>, vector<32x288xbf16>, vector<1x288xf32> -> vector<1x288xf32>
    %187 = arith.addf %182, %186 : vector<1x288xf32>
    %c0_166 = arith.constant 0 : index
    %c37_167 = arith.constant 37 : index
    %188 = vector.load %arg9[%c0_166, %c37_167] : memref<32x326xf32, #tpu.memory_space<vmem>>, vector<32x288xf32>
    %189 = arith.truncf %188 : vector<32x288xf32> to vector<32x288xbf16>
    %c0_168 = arith.constant 0 : index
    %c224_169 = arith.constant 224 : index
    %190 = vector.load %arg4[%c0_168, %c224_169] : memref<1x288xbf16, #tpu.memory_space<vmem>>, vector<1x32xbf16>
    %cst_170 = arith.constant dense<0.000000e+00> : vector<1x288xf32>
    %191 = tpu.matmul %190, %189, %cst_170 {dimension_numbers = #tpu.dot_dimension_numbers<[1], [0], [0], [1], [0, 0, 1, 1], [], []>} : vector<1x32xbf16>, vector<32x288xbf16>, vector<1x288xf32> -> vector<1x288xf32>
    %192 = arith.addf %187, %191 : vector<1x288xf32>
    %c0_171 = arith.constant 0 : index
    %c38_172 = arith.constant 38 : index
    %193 = vector.load %arg9[%c0_171, %c38_172] : memref<32x326xf32, #tpu.memory_space<vmem>>, vector<32x288xf32>
    %194 = arith.truncf %193 : vector<32x288xf32> to vector<32x288xbf16>
    %c0_173 = arith.constant 0 : index
    %c256 = arith.constant 256 : index
    %195 = vector.load %arg4[%c0_173, %c256] : memref<1x288xbf16, #tpu.memory_space<vmem>>, vector<1x32xbf16>
    %cst_174 = arith.constant dense<0.000000e+00> : vector<1x288xf32>
    %196 = tpu.matmul %195, %194, %cst_174 {dimension_numbers = #tpu.dot_dimension_numbers<[1], [0], [0], [1], [0, 0, 1, 1], [], []>} : vector<1x32xbf16>, vector<32x288xbf16>, vector<1x288xf32> -> vector<1x288xf32>
    %197 = arith.addf %192, %196 : vector<1x288xf32>
    %c0_175 = arith.constant 0 : index
    %c0_176 = arith.constant 0 : index
    %198 = vector.load %arg5[%c0_175, %c0_176] : memref<1x1xf32, #tpu.memory_space<vmem>>, vector<1x1xf32>
    %199 = vector.broadcast %198 : vector<1x1xf32> to vector<1x288xf32>
    %200 = arith.addf %197, %199 : vector<1x288xf32>
    %c0_177 = arith.constant 0 : index
    %c0_178 = arith.constant 0 : index
    %c0_179 = arith.constant 0 : index
    %201 = vector.load %arg6[%c0_177, %c0_178, %c0_179] : memref<1x1x288xf32, #tpu.memory_space<vmem>>, vector<1x1x288xf32>
    %202 = vector.shape_cast %201 : vector<1x1x288xf32> to vector<1x288xf32>
    %203 = vector.shape_cast %200 : vector<1x288xf32> to vector<1x1x288xf32>
    tpu.vector_store %arg6[%c0_177, %c0_178, %c0_179], %203 {strides = array<i32>} : memref<1x1x288xf32, #tpu.memory_space<vmem>>, vector<1x1x288xf32>,
    return
  }
  func.func @transform_0(%arg0: i32) -> (i32, i32, i32) {
    %c0_i32 = arith.constant 0 : i32
    %c0_i32_0 = arith.constant 0 : i32
    %c0_i32_1 = arith.constant 0 : i32
    return %arg0, %c0_i32, %c0_i32_0 : i32, i32, i32
  }
  func.func @transform_1(%arg0: i32) -> (i32, i32) {
    %c0_i32 = arith.constant 0 : i32
    %c0_i32_0 = arith.constant 0 : i32
    %c0_i32_1 = arith.constant 0 : i32
    return %c0_i32, %c0_i32_0 : i32, i32
  }
  func.func @transform_2(%arg0: i32) -> (i32, i32) {
    %c0_i32 = arith.constant 0 : i32
    %c0_i32_0 = arith.constant 0 : i32
    %c0_i32_1 = arith.constant 0 : i32
    return %c0_i32, %c0_i32_0 : i32, i32
  }
  func.func @transform_3(%arg0: i32) -> (i32, i32) {
    %c0_i32 = arith.constant 0 : i32
    %c0_i32_0 = arith.constant 0 : i32
    %c0_i32_1 = arith.constant 0 : i32
    return %c0_i32, %c0_i32_0 : i32, i32
  }
  func.func @transform_4(%arg0: i32) -> (i32, i32) {
    %c0_i32 = arith.constant 0 : i32
    %c0_i32_0 = arith.constant 0 : i32
    %c0_i32_1 = arith.constant 0 : i32
    return %c0_i32, %c0_i32_0 : i32, i32
  }
  func.func @transform_5(%arg0: i32) -> (i32, i32, i32) {
    %c0_i32 = arith.constant 0 : i32
    %c0_i32_0 = arith.constant 0 : i32
    %c0_i32_1 = arith.constant 0 : i32
    return %arg0, %c0_i32, %c0_i32_0 : i32, i32, i32
  }
}

</mosaic_0001>

<llo_original>
// kernel: disp_head_pallas.1
$region0: #{disp_head_pallas.1}
  #allocation0 [shape = 'u32[]', space=smem, size = 0x4, offset = 0x4, fixed_abs, tag = 'smem constant byte address 0x4 - core index']
  #allocation1 [shape = 'u32[144,128]{1,0:T(1,128)}', space=vmem, size = 0x12000, scoped, tag = 'internal scratch']
  #allocation2 [shape = 'bf16[16,326]{1,0:T(16,128)(2,1)}', space=vmem, size = 0x3000, scoped, tag = 'scratch operand']
  #allocation3 [shape = 'bf16[144,288]{1,0:T(16,128)(2,1)}', space=vmem, size = 0x1b000, scoped, tag = 'scratch operand']
  #allocation4 [shape = 'f32[32,326]{1,0:T(8,128)}', space=vmem, size = 0xc000, scoped, tag = 'scratch operand']
  #allocation5 [shape = 'f32[1,1]{1,0:T(1,128)S(1)}', space=vmem, size = 0x200, scoped, tag = 'scoped memory for disp_head_pallas.1']
  %s0 = inlined_call_operand.vmem [shape: f32[2,16,256], index: 0, kind: input, shape index: {}]
  %s1 = inlined_call_operand.vmem [shape: bf16[32,144], index: 1, kind: input, shape index: {}]
  %s2 = inlined_call_operand.vmem [shape: f32[32,1], index: 2, kind: input, shape index: {}]
  %s3 = inlined_call_operand.vmem [shape: bf16[1,288], index: 3, kind: input, shape index: {}]
  %s4 = inlined_call_operand.<no memory space> [shape: f32[1,1], index: 4, kind: input, shape index: {}]
  %s5 = inlined_call_operand.vmem [shape: f32[2,1,288], index: 5, kind: output, shape index: {}]
  %s6 = sld [smem:[#allocation0]]
  $region53: #{disp_head_pallas.1} parent=0
    _
  %s8 = ssub.s32 1, %s6
  %s9 = scalar_select 0, %s8, %s6
  %v10 = vstv %s4
  %11 = vst [vmem:[#allocation5] sm:$0x1] %v10
  loop: start=0, step=1, limit=4
  $region2: #{disp_head_pallas.1} parent=0 // loop_pre_header
    _
  $region3: #{disp_head_pallas.1} parent=0 // loop_header
    %s13 = sphi 0, %s17
    %p14 = scmp.ge.s32.totalorder %s13, 4
    %s23 = sphi 0, %s25
    %s26 = sphi 0, %s23
    %s27 = sphi 0, %s26
    %s43 = sphi 0, %s27
    %s47 = sphi 0, %s47
    %s49 = sphi 0, %s47
    %s50 = sphi 0, %s49
    %s64 = sphi 0, %s50
    %s68 = sphi 0, %s68
    %s70 = sphi 0, %s68
    %s71 = sphi 0, %s70
    %s85 = sphi 0, %s71
    %s89 = sphi 0, %s89
    %s91 = sphi 0, %s89
    %s92 = sphi 0, %s91
    %s106 = sphi 0, %s92
    %s110 = sphi 0, %s110
    %s112 = sphi 0, %s110
    %s113 = sphi 0, %s112
    %s127 = sphi 0, %s113
    %s133 = sphi 0, %s135
    %s136 = sphi 0, %s133
    %s137 = sphi 0, %s136
    %s153 = sphi 0, %s137
  $region4: #{disp_head_pallas.1} parent=0 // loop_header_branch
    %16 = sbr.rel (%p14) target = $region8
  $region5: #{disp_head_pallas.1} parent=0 // loop_body
    %s18 = ssub.s32 %s13, 1
    %s19 = ssub.s32 %s13, 2
    %s20 = sadd.s32 %s13, 1
    %s21 = ssub.s32 %s13, %s20
    %p22 = scmp.eq.s32.totalorder %s21, 0
    %s24 = sadd.s32 %s23, 1
    %s25 = scalar_select %p22, %s23, %s24
    %p28 = pneg %p22
    %p29 = scmp.eq.s32.totalorder %s13, 1
    %p30 = por %p28, %p29
    %p31 = scmp.ne.s32.totalorder %s23, %s26
    %p32 = scmp.eq.s32.totalorder %s13, 0
    %p33 = por %p31, %p32
    %p34 = scmp.ne.s32.totalorder %s23, %s26
    %p35 = scmp.eq.s32.totalorder %s18, 1
    %p36 = por %p34, %p35
    %p37 = scmp.ne.s32.totalorder %s26, %s27
    %p38 = scmp.eq.s32.totalorder %s18, 0
    %p39 = por %p37, %p38
    %p40 = scmp.ne.s32.totalorder %s26, %s27
    %p41 = scmp.eq.s32.totalorder %s19, 1
    %p42 = por %p40, %p41
    %p44 = scmp.ne.s32.totalorder %s27, %s43
    %p45 = scmp.eq.s32.totalorder %s19, 0
    %p46 = por %p44, %p45
    %s48 = sadd.s32 %s47, 1
    %p51 = scmp.eq.s32.totalorder %s13, 1
    %p52 = scmp.ne.s32.totalorder %s47, %s49
    %p53 = scmp.eq.s32.totalorder %s13, 0
    %p54 = por %p52, %p53
    %p55 = scmp.ne.s32.totalorder %s47, %s49
    %p56 = scmp.eq.s32.totalorder %s18, 1
    %p57 = por %p55, %p56
    %p58 = scmp.ne.s32.totalorder %s49, %s50
    %p59 = scmp.eq.s32.totalorder %s18, 0
    %p60 = por %p58, %p59
    %p61 = scmp.ne.s32.totalorder %s49, %s50
    %p62 = scmp.eq.s32.totalorder %s19, 1
    %p63 = por %p61, %p62
    %p65 = scmp.ne.s32.totalorder %s50, %s64
    %p66 = scmp.eq.s32.totalorder %s19, 0
    %p67 = por %p65, %p66
    %s69 = sadd.s32 %s68, 1
    %p72 = scmp.eq.s32.totalorder %s13, 1
    %p73 = scmp.ne.s32.totalorder %s68, %s70
    %p74 = scmp.eq.s32.totalorder %s13, 0
    %p75 = por %p73, %p74
    %p76 = scmp.ne.s32.totalorder %s68, %s70
    %p77 = scmp.eq.s32.totalorder %s18, 1
    %p78 = por %p76, %p77
    %p79 = scmp.ne.s32.totalorder %s70, %s71
    %p80 = scmp.eq.s32.totalorder %s18, 0
    %p81 = por %p79, %p80
    %p82 = scmp.ne.s32.totalorder %s70, %s71
    %p83 = scmp.eq.s32.totalorder %s19, 1
    %p84 = por %p82, %p83
    %p86 = scmp.ne.s32.totalorder %s71, %s85
    %p87 = scmp.eq.s32.totalorder %s19, 0
    %p88 = por %p86, %p87
    %s90 = sadd.s32 %s89, 1
    %p93 = scmp.eq.s32.totalorder %s13, 1
    %p94 = scmp.ne.s32.totalorder %s89, %s91
    %p95 = scmp.eq.s32.totalorder %s13, 0
    %p96 = por %p94, %p95
    %p97 = scmp.ne.s32.totalorder %s89, %s91
    %p98 = scmp.eq.s32.totalorder %s18, 1
    %p99 = por %p97, %p98
    %p100 = scmp.ne.s32.totalorder %s91, %s92
    %p101 = scmp.eq.s32.totalorder %s18, 0
    %p102 = por %p100, %p101
    %p103 = scmp.ne.s32.totalorder %s91, %s92
    %p104 = scmp.eq.s32.totalorder %s19, 1
    %p105 = por %p103, %p104
    %p107 = scmp.ne.s32.totalorder %s92, %s106
    %p108 = scmp.eq.s32.totalorder %s19, 0
    %p109 = por %p107, %p108
    %s111 = sadd.s32 %s110, 1
    %p114 = scmp.eq.s32.totalorder %s13, 1
    %p115 = scmp.ne.s32.totalorder %s110, %s112
    %p116 = scmp.eq.s32.totalorder %s13, 0
    %p117 = por %p115, %p116
    %p118 = scmp.ne.s32.totalorder %s110, %s112
    %p119 = scmp.eq.s32.totalorder %s18, 1
    %p120 = por %p118, %p119
    %p121 = scmp.ne.s32.totalorder %s112, %s113
    %p122 = scmp.eq.s32.totalorder %s18, 0
    %p123 = por %p121, %p122
    %p124 = scmp.ne.s32.totalorder %s112, %s113
    %p125 = scmp.eq.s32.totalorder %s19, 1
    %p126 = por %p124, %p125
    %p128 = scmp.ne.s32.totalorder %s113, %s127
    %p129 = scmp.eq.s32.totalorder %s19, 0
    %p130 = por %p128, %p129
    %s131 = ssub.s32 %s13, %s20
    %p132 = scmp.eq.s32.totalorder %s131, 0
    %s134 = sadd.s32 %s133, 1
    %s135 = scalar_select %p132, %s133, %s134
    %p138 = pneg %p132
    %p139 = scmp.eq.s32.totalorder %s13, 1
    %p140 = por %p138, %p139
    %p141 = scmp.ne.s32.totalorder %s133, %s136
    %p142 = scmp.eq.s32.totalorder %s13, 0
    %p143 = por %p141, %p142
    %p144 = scmp.ne.s32.totalorder %s133, %s136
    %p145 = scmp.eq.s32.totalorder %s18, 1
    %p146 = por %p144, %p145
    %p147 = scmp.ne.s32.totalorder %s136, %s137
    %p148 = scmp.eq.s32.totalorder %s18, 0
    %p149 = por %p147, %p148
    %p150 = scmp.ne.s32.totalorder %s136, %s137
    %p151 = scmp.eq.s32.totalorder %s19, 1
    %p152 = por %p150, %p151
    %p154 = scmp.ne.s32.totalorder %s137, %s153
    %p155 = scmp.eq.s32.totalorder %s19, 0
    %p156 = por %p154, %p155
    %p157 = scmp.le.s32.totalorder 1, %s13
    %p158 = scmp.lt.s32.totalorder %s13, 3
    %p159 = pnand %p157, %p158
    %p160 = pneg %p159
    // Predicated region
    $region9: #{disp_head_pallas.1} parent=5 // pred_check
      _
    $region10: #{disp_head_pallas.1} parent=5 // pred_check_branch
      %162 = sbr.rel (%p159) target = $region12
    $region11: #{disp_head_pallas.1} parent=5 // pred_region
      %s163 = ssub.s32 %s13, 1
      // Predicated region
      $region13: #{disp_head_pallas.1} parent=11 // pred_check
        %p164 = pneg %p60
      $region14: #{disp_head_pallas.1} parent=11 // pred_check_branch
        %166 = sbr.rel (%p164) target = $region16
      $region15: #{disp_head_pallas.1} parent=11 // pred_region
        _
      $region16: #{disp_head_pallas.1} parent=11 // pred_fallthru
        _
      // Predicated region
      $region17: #{disp_head_pallas.1} parent=11 // pred_check
        %p167 = pneg %p81
      $region18: #{disp_head_pallas.1} parent=11 // pred_check_branch
        %169 = sbr.rel (%p167) target = $region20
      $region19: #{disp_head_pallas.1} parent=11 // pred_region
        _
      $region20: #{disp_head_pallas.1} parent=11 // pred_fallthru
        _
      // Predicated region
      $region21: #{disp_head_pallas.1} parent=11 // pred_check
        %p170 = pneg %p102
      $region22: #{disp_head_pallas.1} parent=11 // pred_check_branch
        %172 = sbr.rel (%p170) target = $region24
      $region23: #{disp_head_pallas.1} parent=11 // pred_region
        _
      $region24: #{disp_head_pallas.1} parent=11 // pred_fallthru
        _
      // Predicated region
      $region25: #{disp_head_pallas.1} parent=11 // pred_check
        %p173 = pneg %p123
      $region26: #{disp_head_pallas.1} parent=11 // pred_check_branch
        %175 = sbr.rel (%p173) target = $region28
      $region27: #{disp_head_pallas.1} parent=11 // pred_region
        _
      $region28: #{disp_head_pallas.1} parent=11 // pred_fallthru
        _
    $region12: #{disp_head_pallas.1} parent=5 // pred_fallthru
      _
    %p176 = scmp.lt.s32.totalorder %s13, 2
    // Predicated region
    $region29: #{disp_head_pallas.1} parent=5 // pred_check
      %p177 = pneg %p176
    $region30: #{disp_head_pallas.1} parent=5 // pred_check_branch
      %179 = sbr.rel (%p177) target = $region32
    $region31: #{disp_head_pallas.1} parent=5 // pred_region
      // Predicated region
      $region33: #{disp_head_pallas.1} parent=31 // pred_check
        %p180 = pneg %p33
      $region34: #{disp_head_pallas.1} parent=31 // pred_check_branch
        %182 = sbr.rel (%p180) target = $region36
      $region35: #{disp_head_pallas.1} parent=31 // pred_region
        %p183 = scmp.lt.s32.totalorder %s13, 1
        %s184 = scalar_select %p183, %s13, 1
        %s185 = smul.addr %s184, 4
        %s186 = smul.addr %s185, 8
        %s187 = scalar_lea.vmem %s0, %s186
      $region36: #{disp_head_pallas.1} parent=31 // pred_fallthru
        _
    $region32: #{disp_head_pallas.1} parent=5 // pred_fallthru
      _
    %p188 = scmp.le.s32.totalorder 1, %s13
    %p189 = scmp.lt.s32.totalorder %s13, 3
    %p190 = pnand %p188, %p189
    %p191 = pneg %p190
    // Predicated region
    $region37: #{disp_head_pallas.1} parent=5 // pred_check
      _
    $region38: #{disp_head_pallas.1} parent=5 // pred_check_branch
      %193 = sbr.rel (%p190) target = $region40
    $region39: #{disp_head_pallas.1} parent=5 // pred_region
      %s194 = ssub.s32 %s13, 1
      %p195 = scmp.lt.s32.totalorder %s18, 1
      %s196 = scalar_select %p195, %s18, 1
      %s197 = smul.addr %s196, 4
      %s198 = smul.addr %s197, 8
      %s199 = scalar_lea.vmem %s0, %s198
      %p200 = pneg %p39
      %p201 = pneg %p36
      %p202 = pneg %p60
      %p203 = pneg %p57
      %p204 = pneg %p81
      %p205 = pneg %p78
      %p206 = pneg %p102
      %p207 = pneg %p99
      %p208 = pneg %p123
      %p209 = pneg %p120
      %p210 = pneg %p149
      %p211 = pneg %p146
      %p212 = scmp.lt.s32.totalorder %s18, 1
      %s213 = scalar_select %p212, %s18, 1
      %s214 = smul.addr %s213, 3
      %s215 = scalar_lea.vmem %s5, %s214
      %p216 = scmp.lt.s32.totalorder %s18, 1
      %s217 = scalar_select %p216, %s18, 1
      %s218 = smul.addr %s217, 4
      %s219 = smul.addr %s218, 8
      %s220 = scalar_lea.vmem %s0, %s219
      %p221 = scmp.lt.s32.totalorder %s18, 1
      %s222 = scalar_select %p221, %s18, 1
      %s223 = smul.addr %s222, 3
      %s224 = scalar_lea.vmem %s5, %s223
      %v226 = vlaneseq
      %v227 = vand.u32 %v226, 127
      %v228 = vadd.s32 %v227, 128
      %v229 = vadd.s32 %v227, 256
      %vm230 = vcmp.lt.s32.totalorder %v227, 0
      %v231 = vsub.s32 0, %v227
      %v232 = vsel %vm230, %v231, %v227
      %v233 = vmul.u32.u64.compose %v232, 3817748708
      %v234 = vextract.low.u32 %v233
      %v235 = vextract.high.u32 %v233
      %v236 = vshrl.u32 %v235, 4
      %v237 = vmul.u32 %v236, 18
      %v238 = vsub.s32 %v232, %v237
      %v239 = vsub.s32 0, %v238
      %v240 = vsel %vm230, %v239, %v238
      %vm241 = vcmp.lt.s32.totalorder %v228, 0
      %v242 = vsub.s32 0, %v228
      %v243 = vsel %vm241, %v242, %v228
      %v244 = vmul.u32.u64.compose %v243, 3817748708
      %v245 = vextract.low.u32 %v244
      %v246 = vextract.high.u32 %v244
      %v247 = vshrl.u32 %v246, 4
      %v248 = vmul.u32 %v247, 18
      %v249 = vsub.s32 %v243, %v248
      %v250 = vsub.s32 0, %v249
      %v251 = vsel %vm241, %v250, %v249
      %vm252 = vcmp.lt.s32.totalorder %v229, 0
      %v253 = vsub.s32 0, %v229
      %v254 = vsel %vm252, %v253, %v229
      %v255 = vmul.u32.u64.compose %v254, 3817748708
      %v256 = vextract.low.u32 %v255
      %v257 = vextract.high.u32 %v255
      %v258 = vshrl.u32 %v257, 4
      %v259 = vmul.u32 %v258, 18
      %v260 = vsub.s32 %v254, %v259
      %v261 = vsub.s32 0, %v260
      %v262 = vsel %vm252, %v261, %v260
      %vm263 = vcmp.ne.s32.totalorder %v240, 0
      %vm264 = vcmp.ne.s32.totalorder %v251, 0
      %vm265 = vcmp.ne.s32.totalorder %v262, 0
      %vm266 = vcmp.lt.s32.totalorder %v240, 0
      %vm267 = vcmp.lt.s32.totalorder %v251, 0
      %vm268 = vcmp.lt.s32.totalorder %v262, 0
      %vm269 = vmand %vm266, %vm263
      %vm270 = vmand %vm267, %vm264
      %vm271 = vmand %vm268, %vm265
      %v272 = vadd.s32 %v240, 18
      %v273 = vadd.s32 %v251, 18
      %v274 = vadd.s32 %v262, 18
      %v275 = vsel %vm269, %v272, %v240
      %v276 = vsel %vm270, %v273, %v251
      %v277 = vsel %vm271, %v274, %v262
      %vm278 = vcmp.lt.s32.totalorder %v275, 16
      %vm279 = vcmp.lt.s32.totalorder %v276, 16
      %vm280 = vcmp.lt.s32.totalorder %v277, 16
      %v281 = vsel %vm278, 1, 0
      %v282 = vsel %vm279, 1, 0
      %v283 = vsel %vm280, 1, 0
      %v284 = vcvt.s32.f32 %v281
      %v285 = vcvt.s32.f32 %v282
      %v286 = vcvt.s32.f32 %v283
      %v287 = vld [vmem:[%s220] sm:$0xff]
      %v288 = vld [vmem:[%s220 + $0x10] sm:$0xff]
      %v289 = vpack.c.bf16 %v288, %v287
      %291 = vrot.lane.b32.xlu0 %v289, 19
      %v292 = vpop.permute.xlu0 %291
      %vm294 = vcmask 285848
      %295 = vst.msk [vmem:[#allocation2] sm:$0xff] %vm294, %v292
      %v296 = vld [vmem:[%s220] sm:$0xff]
      %v297 = vld [vmem:[%s220 + $0x10] sm:$0xff]
      %v298 = vpack.c.bf16 %v297, %v296
      %300 = vrot.lane.b32.xlu0 %v298, 21
      %v301 = vpop.permute.xlu0 %300
      %vm303 = vcmask 433448
      %304 = vst.msk [vmem:[#allocation2] sm:$0xff] %vm303, %v301
      %v305 = vld [vmem:[%s220] sm:$0xff]
      %v306 = vld [vmem:[%s220 + $0x10] sm:$0xff]
      %v307 = vpack.c.bf16 %v306, %v305
      %309 = vrot.lane.b32.xlu0 %v307, 23
      %v310 = vpop.permute.xlu0 %309
      %vm312 = vcmask 581048
      %313 = vst.msk [vmem:[#allocation2] sm:$0xff] %vm312, %v310
      %v314 = vld [vmem:[%s220] sm:$0xff]
      %v315 = vld [vmem:[%s220 + $0x10] sm:$0xff]
      %v316 = vpack.c.bf16 %v315, %v314
      %318 = vrot.lane.b32.xlu0 %v316, 25
      %v319 = vpop.permute.xlu0 %318
      %vm321 = vcmask 728648
      %322 = vst.msk [vmem:[#allocation2] sm:$0xff] %vm321, %v319
      %v323 = vld [vmem:[%s220] sm:$0xff]
      %v324 = vld [vmem:[%s220 + $0x10] sm:$0xff]
      %v325 = vpack.c.bf16 %v324, %v323
      %327 = vrot.lane.b32.xlu0 %v325, 27
      %v328 = vpop.permute.xlu0 %327
      %vm330 = vcmask 876248
      %331 = vst.msk [vmem:[#allocation2] sm:$0xff] %vm330, %v328
      %v332 = vld [vmem:[%s220] sm:$0xff]
      %v333 = vld [vmem:[%s220 + $0x10] sm:$0xff]
      %v334 = vpack.c.bf16 %v333, %v332
      %336 = vrot.lane.b32.xlu0 %v334, 29
      %v337 = vpop.permute.xlu0 %336
      %vm339 = vcmask 1023848
      %340 = vst.msk [vmem:[#allocation2] sm:$0xff] %vm339, %v337
      %v341 = vld [vmem:[%s220] sm:$0xff]
      %v342 = vld [vmem:[%s220 + $0x10] sm:$0xff]
      %v343 = vpack.c.bf16 %v342, %v341
      %345 = vrot.lane.b32.xlu0 %v343, 31
      %v346 = vpop.permute.xlu0 %345
      %vm348 = vcmask 1048568
      %349 = vst.msk [vmem:[#allocation2] sm:$0xff] %vm348, %v346
      %vm350 = vcmask 121856
      %351 = vst.msk [vmem:[#allocation2 + $0x8] sm:$0xff] %vm350, %v346
      %v352 = vld [vmem:[%s220] sm:$0xff]
      %v353 = vld [vmem:[%s220 + $0x10] sm:$0xff]
      %v354 = vpack.c.bf16 %v353, %v352
      %356 = vrot.lane.b32.xlu0 %v354, 33
      %v357 = vpop.permute.xlu0 %356
      %vm359 = vcmask 269448
      %360 = vst.msk [vmem:[#allocation2 + $0x8] sm:$0xff] %vm359, %v357
      %v361 = vld [vmem:[%s220 + $0x8] sm:$0xff]
      %v362 = vld [vmem:[%s220 + $0x18] sm:$0xff]
      %v363 = vpack.c.bf16 %v362, %v361
      %365 = vrot.lane.b32.xlu0 %v363, 35
      %v366 = vpop.permute.xlu0 %365
      %vm368 = vcmask 417048
      %369 = vst.msk [vmem:[#allocation2 + $0x8] sm:$0xff] %vm368, %v366
      %v370 = vld [vmem:[%s220 + $0x8] sm:$0xff]
      %v371 = vld [vmem:[%s220 + $0x18] sm:$0xff]
      %v372 = vpack.c.bf16 %v371, %v370
      %374 = vrot.lane.b32.xlu0 %v372, 37
      %v375 = vpop.permute.xlu0 %374
      %vm377 = vcmask 564648
      %378 = vst.msk [vmem:[#allocation2 + $0x8] sm:$0xff] %vm377, %v375
      %v379 = vld [vmem:[%s220 + $0x8] sm:$0xff]
      %v380 = vld [vmem:[%s220 + $0x18] sm:$0xff]
      %v381 = vpack.c.bf16 %v380, %v379
      %383 = vrot.lane.b32.xlu0 %v381, 39
      %v384 = vpop.permute.xlu0 %383
      %vm386 = vcmask 712248
      %387 = vst.msk [vmem:[#allocation2 + $0x8] sm:$0xff] %vm386, %v384
      %v388 = vld [vmem:[%s220 + $0x8] sm:$0xff]
      %v389 = vld [vmem:[%s220 + $0x18] sm:$0xff]
      %v390 = vpack.c.bf16 %v389, %v388
      %392 = vrot.lane.b32.xlu0 %v390, 41
      %v393 = vpop.permute.xlu0 %392
      %vm395 = vcmask 859848
      %396 = vst.msk [vmem:[#allocation2 + $0x8] sm:$0xff] %vm395, %v393
      %v397 = vld [vmem:[%s220 + $0x8] sm:$0xff]
      %v398 = vld [vmem:[%s220 + $0x18] sm:$0xff]
      %v399 = vpack.c.bf16 %v398, %v397
      %401 = vrot.lane.b32.xlu0 %v399, 43
      %v402 = vpop.permute.xlu0 %401
      %vm404 = vcmask 1007448
      %405 = vst.msk [vmem:[#allocation2 + $0x8] sm:$0xff] %vm404, %v402
      %v406 = vld [vmem:[%s220 + $0x8] sm:$0xff]
      %v407 = vld [vmem:[%s220 + $0x18] sm:$0xff]
      %v408 = vpack.c.bf16 %v407, %v406
      %410 = vrot.lane.b32.xlu0 %v408, 45
      %v411 = vpop.permute.xlu0 %410
      %vm413 = vcmask 1048552
      %414 = vst.msk [vmem:[#allocation2 + $0x8] sm:$0xff] %vm413, %v411
      %vm415 = vcmask 105472
      %416 = vst.msk [vmem:[#allocation2 + $0x10] sm:$0xff] %vm415, %v411
      %v417 = vld [vmem:[%s220 + $0x8] sm:$0xff]
      %v418 = vld [vmem:[%s220 + $0x18] sm:$0xff]
      %v419 = vpack.c.bf16 %v418, %v417
      %421 = vrot.lane.b32.xlu0 %v419, 47
      %v422 = vpop.permute.xlu0 %421
      %vm424 = vcmask 253048
      %425 = vst.msk [vmem:[#allocation2 + $0x10] sm:$0xff] %vm424, %v422
      %v426 = vld [vmem:[%s220 + $0x8] sm:$0xff]
      %v427 = vld [vmem:[%s220 + $0x18] sm:$0xff]
      %v428 = vpack.c.bf16 %v427, %v426
      %430 = vrot.lane.b32.xlu0 %v428, 49
      %v431 = vpop.permute.xlu0 %430
      %vm433 = vcmask 400648
      %434 = vst.msk [vmem:[#allocation2 + $0x10] sm:$0xff] %vm433, %v431
      %vm435 = vcmask 154624
      %436 = vst.msk [vmem:[#allocation2] sm:$0xff] %vm435, 0
      %vm437 = vcmask 302360
      %438 = vst.msk [vmem:[#allocation2] sm:$0xff] %vm437, 0
      %vm439 = vcmask 449960
      %440 = vst.msk [vmem:[#allocation2] sm:$0xff] %vm439, 0
      %vm441 = vcmask 597560
      %442 = vst.msk [vmem:[#allocation2] sm:$0xff] %vm441, 0
      %vm443 = vcmask 745160
      %444 = vst.msk [vmem:[#allocation2] sm:$0xff] %vm443, 0
      %vm445 = vcmask 892760
      %446 = vst.msk [vmem:[#allocation2] sm:$0xff] %vm445, 0
      %vm447 = vcmask 1040360
      %448 = vst.msk [vmem:[#allocation2] sm:$0xff] %vm447, 0
      %vm449 = vcmask 138360
      %450 = vst.msk [vmem:[#allocation2 + $0x8] sm:$0xff] %vm449, 0
      %vm451 = vcmask 285960
      %452 = vst.msk [vmem:[#allocation2 + $0x8] sm:$0xff] %vm451, 0
      %vm453 = vcmask 433560
      %454 = vst.msk [vmem:[#allocation2 + $0x8] sm:$0xff] %vm453, 0
      %vm455 = vcmask 581160
      %456 = vst.msk [vmem:[#allocation2 + $0x8] sm:$0xff] %vm455, 0
      %vm457 = vcmask 728760
      %458 = vst.msk [vmem:[#allocation2 + $0x8] sm:$0xff] %vm457, 0
      %vm459 = vcmask 876360
      %460 = vst.msk [vmem:[#allocation2 + $0x8] sm:$0xff] %vm459, 0
      %vm461 = vcmask 1023960
      %462 = vst.msk [vmem:[#allocation2 + $0x8] sm:$0xff] %vm461, 0
      %vm463 = vcmask 121960
      %464 = vst.msk [vmem:[#allocation2 + $0x10] sm:$0xff] %vm463, 0
      %vm465 = vcmask 269560
      %466 = vst.msk [vmem:[#allocation2 + $0x10] sm:$0xff] %vm465, 0
      %vm467 = vcmask 572808
      %468 = vst.msk [vmem:[#allocation2 + $0x10] sm:$0xff] %vm467, 0
      %v469 = vld [vmem:[#allocation2] sm:$0xff]
      %v470 = vld [vmem:[#allocation2 + $0x8] sm:$0xff]
      %v471 = vld [vmem:[#allocation2 + $0x10] sm:$0xff]
      %472 = vst [vmem:[#allocation3] sm:$0xff] %v469
      %473 = vst [vmem:[#allocation3 + $0x8] sm:$0xff] %v470
      %vm474 = vcmask 261120
      %475 = vst.msk [vmem:[#allocation3 + $0x10] sm:$0xff] %vm474, %v471
      %v476 = vld [vmem:[#allocation2] sm:$0xff]
      %v477 = vld [vmem:[#allocation2 + $0x8] sm:$0xff]
      %v478 = vld [vmem:[#allocation2 + $0x10] sm:$0xff]
      %482 = vrot.lane.b32.xlu0 %v476, 127
      %v483 = vpop.permute.xlu0 %482
      %484 = vrot.lane.b32.xlu0 %v477, 127
      %v485 = vpop.permute.xlu0 %484
      %486 = vrot.lane.b32.xlu0 %v478, 127
      %v487 = vpop.permute.xlu0 %486
      %vm488 = vcmask 1039360
      %v489 = vsel %vm488, %v483, %v485
      %v490 = vsel %vm488, %v485, %v487
      %494 = vst [vmem:[#allocation3 + $0x18] sm:$0xff] %v489
      %495 = vst [vmem:[#allocation3 + $0x20] sm:$0xff] %v490
      %496 = vst.msk [vmem:[#allocation3 + $0x28] sm:$0xff] %vm474, %v487
      %v497 = vld [vmem:[#allocation2] sm:$0xff]
      %v498 = vld [vmem:[#allocation2 + $0x8] sm:$0xff]
      %v499 = vld [vmem:[#allocation2 + $0x10] sm:$0xff]
      %503 = vrot.lane.b32.xlu0 %v497, 126
      %v504 = vpop.permute.xlu0 %503
      %505 = vrot.lane.b32.xlu0 %v498, 126
      %v506 = vpop.permute.xlu0 %505
      %507 = vrot.lane.b32.xlu0 %v499, 126
      %v508 = vpop.permute.xlu0 %507
      %vm509 = vcmask 1031168
      %v510 = vsel %vm509, %v504, %v506
      %v511 = vsel %vm509, %v506, %v508
      %515 = vst [vmem:[#allocation3 + $0x30] sm:$0xff] %v510
      %516 = vst [vmem:[#allocation3 + $0x38] sm:$0xff] %v511
      %517 = vst.msk [vmem:[#allocation3 + $0x40] sm:$0xff] %vm474, %v508
      %v518 = vld [vmem:[#allocation2] sm:$0xff]
      %v519 = vld [vmem:[#allocation2 + $0x8] sm:$0xff]
      %v520 = vld [vmem:[#allocation2 + $0x10] sm:$0xff]
      %524 = vrot.lane.b32.xlu0 %v518, 110
      %v525 = vpop.permute.xlu0 %524
      %526 = vrot.lane.b32.xlu0 %v519, 110
      %v527 = vpop.permute.xlu0 %526
      %528 = vrot.lane.b32.xlu0 %v520, 110
      %v529 = vpop.permute.xlu0 %528
      %vm530 = vcmask 900096
      %v531 = vsel %vm530, %v525, %v527
      %v532 = vsel %vm530, %v527, %v529
      %536 = vst [vmem:[#allocation3 + $0x48] sm:$0xff] %v531
      %537 = vst [vmem:[#allocation3 + $0x50] sm:$0xff] %v532
      %538 = vst.msk [vmem:[#allocation3 + $0x58] sm:$0xff] %vm474, %v529
      %v539 = vld [vmem:[#allocation2] sm:$0xff]
      %v540 = vld [vmem:[#allocation2 + $0x8] sm:$0xff]
      %v541 = vld [vmem:[#allocation2 + $0x10] sm:$0xff]
      %545 = vrot.lane.b32.xlu0 %v539, 109
      %v546 = vpop.permute.xlu0 %545
      %547 = vrot.lane.b32.xlu0 %v540, 109
      %v548 = vpop.permute.xlu0 %547
      %549 = vrot.lane.b32.xlu0 %v541, 109
      %v550 = vpop.permute.xlu0 %549
      %vm551 = vcmask 891904
      %v552 = vsel %vm551, %v546, %v548
      %v553 = vsel %vm551, %v548, %v550
      %557 = vst [vmem:[#allocation3 + $0x60] sm:$0xff] %v552
      %558 = vst [vmem:[#allocation3 + $0x68] sm:$0xff] %v553
      %559 = vst.msk [vmem:[#allocation3 + $0x70] sm:$0xff] %vm474, %v550
      %v560 = vld [vmem:[#allocation2] sm:$0xff]
      %v561 = vld [vmem:[#allocation2 + $0x8] sm:$0xff]
      %v562 = vld [vmem:[#allocation2 + $0x10] sm:$0xff]
      %566 = vrot.lane.b32.xlu0 %v560, 108
      %v567 = vpop.permute.xlu0 %566
      %568 = vrot.lane.b32.xlu0 %v561, 108
      %v569 = vpop.permute.xlu0 %568
      %570 = vrot.lane.b32.xlu0 %v562, 108
      %v571 = vpop.permute.xlu0 %570
      %vm572 = vcmask 883712
      %v573 = vsel %vm572, %v567, %v569
      %v574 = vsel %vm572, %v569, %v571
      %578 = vst [vmem:[#allocation3 + $0x78] sm:$0xff] %v573
      %579 = vst [vmem:[#allocation3 + $0x80] sm:$0xff] %v574
      %580 = vst.msk [vmem:[#allocation3 + $0x88] sm:$0xff] %vm474, %v571
      %v581 = vld [vmem:[#allocation2] sm:$0xff]
      %v582 = vld [vmem:[#allocation2 + $0x8] sm:$0xff]
      %v583 = vld [vmem:[#allocation2 + $0x10] sm:$0xff]
      %587 = vrot.lane.b32.xlu0 %v581, 92
      %v588 = vpop.permute.xlu0 %587
      %589 = vrot.lane.b32.xlu0 %v582, 92
      %v590 = vpop.permute.xlu0 %589
      %591 = vrot.lane.b32.xlu0 %v583, 92
      %v592 = vpop.permute.xlu0 %591
      %vm593 = vcmask 752640
      %v594 = vsel %vm593, %v588, %v590
      %v595 = vsel %vm593, %v590, %v592
      %599 = vst [vmem:[#allocation3 + $0x90] sm:$0xff] %v594
      %600 = vst [vmem:[#allocation3 + $0x98] sm:$0xff] %v595
      %601 = vst.msk [vmem:[#allocation3 + $0xa0] sm:$0xff] %vm474, %v592
      %v602 = vld [vmem:[#allocation2] sm:$0xff]
      %v603 = vld [vmem:[#allocation2 + $0x8] sm:$0xff]
      %v604 = vld [vmem:[#allocation2 + $0x10] sm:$0xff]
      %608 = vrot.lane.b32.xlu0 %v602, 91
      %v609 = vpop.permute.xlu0 %608
      %610 = vrot.lane.b32.xlu0 %v603, 91
      %v611 = vpop.permute.xlu0 %610
      %612 = vrot.lane.b32.xlu0 %v604, 91
      %v613 = vpop.permute.xlu0 %612
      %vm614 = vcmask 744448
      %v615 = vsel %vm614, %v609, %v611
      %v616 = vsel %vm614, %v611, %v613
      %620 = vst [vmem:[#allocation3 + $0xa8] sm:$0xff] %v615
      %621 = vst [vmem:[#allocation3 + $0xb0] sm:$0xff] %v616
      %622 = vst.msk [vmem:[#allocation3 + $0xb8] sm:$0xff] %vm474, %v613
      %v623 = vld [vmem:[#allocation2] sm:$0xff]
      %v624 = vld [vmem:[#allocation2 + $0x8] sm:$0xff]
      %v625 = vld [vmem:[#allocation2 + $0x10] sm:$0xff]
      %629 = vrot.lane.b32.xlu0 %v623, 90
      %v630 = vpop.permute.xlu0 %629
      %631 = vrot.lane.b32.xlu0 %v624, 90
      %v632 = vpop.permute.xlu0 %631
      %633 = vrot.lane.b32.xlu0 %v625, 90
      %v634 = vpop.permute.xlu0 %633
      %vm635 = vcmask 736256
      %v636 = vsel %vm635, %v630, %v632
      %v637 = vsel %vm635, %v632, %v634
      %641 = vst [vmem:[#allocation3 + $0xc0] sm:$0xff] %v636
      %642 = vst [vmem:[#allocation3 + $0xc8] sm:$0xff] %v637
      %643 = vst.msk [vmem:[#allocation3 + $0xd0] sm:$0xff] %vm474, %v634
      %v644 = vld [vmem:[%s1] sm:$0xff]
      %v645 = vld [vmem:[%s1 + $0x8] sm:$0xff]
      %v646 = vld [vmem:[%s1 + $0x10] sm:$0xff]
      %v647 = vld [vmem:[%s1 + $0x18] sm:$0xff]
      %v648 = vld [vmem:[#allocation3] sm:$0xff]
      %v649 = vld [vmem:[#allocation3 + $0x8] sm:$0xff]
      %v650 = vld [vmem:[#allocation3 + $0x10] sm:$0xff]
      %v651 = vld [vmem:[#allocation3 + $0x18] sm:$0xff]
      %v652 = vld [vmem:[#allocation3 + $0x20] sm:$0xff]
      %v653 = vld [vmem:[#allocation3 + $0x28] sm:$0xff]
      %v654 = vld [vmem:[#allocation3 + $0x30] sm:$0xff]
      %v655 = vld [vmem:[#allocation3 + $0x38] sm:$0xff]
      %v656 = vld [vmem:[#allocation3 + $0x40] sm:$0xff]
      %v657 = vld [vmem:[#allocation3 + $0x48] sm:$0xff]
      %v658 = vld [vmem:[#allocation3 + $0x50] sm:$0xff]
      %v659 = vld [vmem:[#allocation3 + $0x58] sm:$0xff]
      %v660 = vld [vmem:[#allocation3 + $0x60] sm:$0xff]
      %v661 = vld [vmem:[#allocation3 + $0x68] sm:$0xff]
      %v662 = vld [vmem:[#allocation3 + $0x70] sm:$0xff]
      %v663 = vld [vmem:[#allocation3 + $0x78] sm:$0xff]
      %v664 = vld [vmem:[#allocation3 + $0x80] sm:$0xff]
      %v665 = vld [vmem:[#allocation3 + $0x88] sm:$0xff]
      %v666 = vld [vmem:[#allocation3 + $0x90] sm:$0xff]
      %v667 = vld [vmem:[#allocation3 + $0x98] sm:$0xff]
      %v668 = vld [vmem:[#allocation3 + $0xa0] sm:$0xff]
      %v669 = vld [vmem:[#allocation3 + $0xa8] sm:$0xff]
      %v670 = vld [vmem:[#allocation3 + $0xb0] sm:$0xff]
      %v671 = vld [vmem:[#allocation3 + $0xb8] sm:$0xff]
      %v672 = vld [vmem:[#allocation3 + $0xc0] sm:$0xff]
      %v673 = vld [vmem:[#allocation3 + $0xc8] sm:$0xff]
      %v674 = vld [vmem:[#allocation3 + $0xd0] sm:$0xff]
      %v675 = vld [vmem:[%s2] sm:$0xff]
      %v676 = vld [vmem:[%s2 + $0x8] sm:$0xff]
      %v677 = vld [vmem:[%s2 + $0x10] sm:$0xff]
      %v678 = vld [vmem:[%s2 + $0x18] sm:$0xff]
      %680 = vset.pattern.permute.xlu0 0
      %681 = vperm.xlu0 %680, %v675
      %v682 = vpop.permute.xlu0 %681
      %685 = vset.pattern.permute.xlu0 0
      %686 = vperm.xlu0 %685, %v676
      %v687 = vpop.permute.xlu0 %686
      %690 = vset.pattern.permute.xlu0 0
      %691 = vperm.xlu0 %690, %v677
      %v692 = vpop.permute.xlu0 %691
      %695 = vset.pattern.permute.xlu0 0
      %696 = vperm.xlu0 %695, %v678
      %v697 = vpop.permute.xlu0 %696
      %v703 = vunpack.c.l.b16 %v644
      %v704 = vunpack.c.h.b16 %v644
      %v705 = vunpack.c.l.b16 %v645
      %v706 = vunpack.c.h.b16 %v645
      %v707 = vunpack.c.l.b16 %v646
      %v708 = vunpack.c.h.b16 %v646
      %v709 = vunpack.c.l.b16 %v647
      %v710 = vunpack.c.h.b16 %v647
      %v711 = vpack.c.b16 %v705, %v703
      %v712 = vpack.c.b16 %v706, %v704
      %v713 = vpack.c.b16 %v709, %v707
      %v714 = vpack.c.b16 %v710, %v708
      %vm717 = vcmask 130048
      %v719 = vsel %vm717, %v712, 0
      %v722 = vsel %vm717, %v714, 0
      %724 = vmatprep.subr.bf16.mxu0 %v649
      %725 = vmatpush1.bf16.msra.mxu0 %v648
      %726 = vmatprep.subr.bf16.mxu0 %v652
      %727 = vmatpush1.bf16.msra.mxu0 %v651
      %728 = vmatprep.subr.bf16.mxu0 %v655
      %729 = vmatpush1.bf16.msra.mxu0 %v654
      %730 = vmatprep.subr.bf16.mxu0 %v658
      %731 = vmatpush1.bf16.msra.mxu0 %v657
      %732 = vmatprep.subr.bf16.mxu0 %v661
      %733 = vmatpush1.bf16.msra.mxu0 %v660
      %734 = vmatprep.subr.bf16.mxu0 %v664
      %735 = vmatpush1.bf16.msra.mxu0 %v663
      %736 = vmatprep.subr.bf16.mxu0 %v667
      %737 = vmatpush1.bf16.msra.mxu0 %v666
      %738 = vmatprep.subr.bf16.mxu0 %v670
      %739 = vmatpush1.bf16.msra.mxu0 %v669
      %740 = vmatprep.subr.bf16.mxu0 %v673
      %741 = vmatpush1.bf16.msra.mxu0 %v672
      %742 = vmatprep.subr.bf16.mxu0 0
      %743 = vmatpush1.bf16.msra.mxu0 0
      %744 = vmatprep.subr.bf16.mxu0 0
      %745 = vmatpush1.bf16.msra.mxu0 0
      %746 = vmatprep.subr.bf16.mxu0 0
      %747 = vmatpush1.bf16.msra.mxu0 0
      %748 = vmatprep.subr.bf16.mxu0 0
      %749 = vmatpush1.bf16.msra.mxu0 0
      %750 = vmatprep.subr.bf16.mxu0 0
      %751 = vmatpush1.bf16.msra.mxu0 0
      %752 = vmatprep.subr.bf16.mxu0 0
      %753 = vmatpush1.bf16.msra.mxu0 0
      %754 = vmatprep.subr.bf16.mxu0 0
      %755 = vmatpush1.bf16.msra.mxu0 0
      %756 = vmatprep.mubr.bf16.mxu0 %v719
      %757 = vmatmul.mubr.bf16.gmra.mrb[0].mxu0 %v711
      %v758 = vpop.f32.mrb[0].mxu0
      %v759 = vadd.f32 %v682, %v758
      %v760 = vpop.f32.mrb[0].mxu0
      %v761 = vadd.f32 %v682, %v760
      %v762 = vpop.f32.mrb[0].mxu0
      %v763 = vadd.f32 %v687, %v762
      %v764 = vpop.f32.mrb[0].mxu0
      %v765 = vadd.f32 %v687, %v764
      %766 = vmatprep.mubr.bf16.mxu0 %v722
      %767 = vmatmul.mubr.bf16.gmra.mrb[0].mxu0 %v713
      %v768 = vpop.f32.mrb[0].mxu0
      %v769 = vadd.f32 %v692, %v768
      %v770 = vpop.f32.mrb[0].mxu0
      %v771 = vadd.f32 %v692, %v770
      %v772 = vpop.f32.mrb[0].mxu0
      %v773 = vadd.f32 %v697, %v772
      %v774 = vpop.f32.mrb[0].mxu0
      %v775 = vadd.f32 %v697, %v774
      %776 = vdwg.mxu0
      %777 = vmatprep.subr.bf16.mxu0 0
      %778 = vmatpush1.bf16.msra.mxu0 %v650
      %779 = vmatprep.subr.bf16.mxu0 0
      %780 = vmatpush1.bf16.msra.mxu0 %v653
      %781 = vmatprep.subr.bf16.mxu0 0
      %782 = vmatpush1.bf16.msra.mxu0 %v656
      %783 = vmatprep.subr.bf16.mxu0 0
      %784 = vmatpush1.bf16.msra.mxu0 %v659
      %785 = vmatprep.subr.bf16.mxu0 0
      %786 = vmatpush1.bf16.msra.mxu0 %v662
      %787 = vmatprep.subr.bf16.mxu0 0
      %788 = vmatpush1.bf16.msra.mxu0 %v665
      %789 = vmatprep.subr.bf16.mxu0 0
      %790 = vmatpush1.bf16.msra.mxu0 %v668
      %791 = vmatprep.subr.bf16.mxu0 0
      %792 = vmatpush1.bf16.msra.mxu0 %v671
      %793 = vmatprep.subr.bf16.mxu0 0
      %794 = vmatpush1.bf16.msra.mxu0 %v674
      %795 = vmatprep.subr.bf16.mxu0 0
      %796 = vmatpush1.bf16.msra.mxu0 0
      %797 = vmatprep.subr.bf16.mxu0 0
      %798 = vmatpush1.bf16.msra.mxu0 0
      %799 = vmatprep.subr.bf16.mxu0 0
      %800 = vmatpush1.bf16.msra.mxu0 0
      %801 = vmatprep.subr.bf16.mxu0 0
      %802 = vmatpush1.bf16.msra.mxu0 0
      %803 = vmatprep.subr.bf16.mxu0 0
      %804 = vmatpush1.bf16.msra.mxu0 0
      %805 = vmatprep.subr.bf16.mxu0 0
      %806 = vmatpush1.bf16.msra.mxu0 0
      %807 = vmatprep.subr.bf16.mxu0 0
      %808 = vmatpush1.bf16.msra.mxu0 0
      %809 = vmatprep.mubr.bf16.mxu0 %v719
      %810 = vmatmul.mubr.bf16.gmra.mrb[0].mxu0 %v711
      %v811 = vpop.f32.mrb[0].mxu0
      %v812 = vadd.f32 %v682, %v811
      %v813 = vpop.f32.mrb[0].mxu0
      %v814 = vpop.f32.mrb[0].mxu0
      %v815 = vadd.f32 %v687, %v814
      %v816 = vpop.f32.mrb[0].mxu0
      %817 = vmatprep.mubr.bf16.mxu0 %v722
      %818 = vmatmul.mubr.bf16.gmra.mrb[0].mxu0 %v713
      %v819 = vpop.f32.mrb[0].mxu0
      %v820 = vadd.f32 %v692, %v819
      %v821 = vpop.f32.mrb[0].mxu0
      %v822 = vpop.f32.mrb[0].mxu0
      %v823 = vadd.f32 %v697, %v822
      %v824 = vpop.f32.mrb[0].mxu0
      %825 = vdwg.mxu0
      %v826 = vmax.f32 %v759, 0.0
      %v827 = vmax.f32 %v761, 0.0
      %v828 = vmax.f32 %v812, 0.0
      %v829 = vmax.f32 %v763, 0.0
      %v830 = vmax.f32 %v765, 0.0
      %v831 = vmax.f32 %v815, 0.0
      %v832 = vmax.f32 %v769, 0.0
      %v833 = vmax.f32 %v771, 0.0
      %v834 = vmax.f32 %v820, 0.0
      %v835 = vmax.f32 %v773, 0.0
      %v836 = vmax.f32 %v775, 0.0
      %v837 = vmax.f32 %v823, 0.0
      %v838 = vmul.f32 %v826, %v284
      %v839 = vmul.f32 %v827, %v285
      %v840 = vmul.f32 %v828, %v286
      %v841 = vmul.f32 %v829, %v284
      %v842 = vmul.f32 %v830, %v285
      %v843 = vmul.f32 %v831, %v286
      %v844 = vmul.f32 %v832, %v284
      %v845 = vmul.f32 %v833, %v285
      %v846 = vmul.f32 %v834, %v286
      %v847 = vmul.f32 %v835, %v284
      %v848 = vmul.f32 %v836, %v285
      %v849 = vmul.f32 %v837, %v286
      %862 = vrot.lane.b32.xlu0 %v838, 19
      %v863 = vpop.permute.xlu0 %862
      %864 = vrot.lane.b32.xlu0 %v839, 19
      %v865 = vpop.permute.xlu0 %864
      %866 = vrot.lane.b32.xlu0 %v840, 19
      %v867 = vpop.permute.xlu0 %866
      %868 = vrot.lane.b32.xlu0 %v841, 19
      %v869 = vpop.permute.xlu0 %868
      %870 = vrot.lane.b32.xlu0 %v842, 19
      %v871 = vpop.permute.xlu0 %870
      %872 = vrot.lane.b32.xlu0 %v843, 19
      %v873 = vpop.permute.xlu0 %872
      %874 = vrot.lane.b32.xlu0 %v844, 19
      %v875 = vpop.permute.xlu0 %874
      %876 = vrot.lane.b32.xlu0 %v845, 19
      %v877 = vpop.permute.xlu0 %876
      %878 = vrot.lane.b32.xlu0 %v846, 19
      %v879 = vpop.permute.xlu0 %878
      %880 = vrot.lane.b32.xlu0 %v847, 19
      %v881 = vpop.permute.xlu0 %880
      %882 = vrot.lane.b32.xlu0 %v848, 19
      %v883 = vpop.permute.xlu0 %882
      %884 = vrot.lane.b32.xlu0 %v849, 19
      %v885 = vpop.permute.xlu0 %884
      %v886 = vsel %vm435, %v863, %v865
      %v887 = vsel %vm435, %v865, %v867
      %v888 = vsel %vm435, %v869, %v871
      %v889 = vsel %vm435, %v871, %v873
      %v890 = vsel %vm435, %v875, %v877
      %v891 = vsel %vm435, %v877, %v879
      %v892 = vsel %vm435, %v881, %v883
      %v893 = vsel %vm435, %v883, %v885
      %vm906 = vcmask 1047704
      %907 = vst.msk [vmem:[#allocation4] sm:$0xff] %vm906, %v863
      %908 = vst [vmem:[#allocation4 + $0x8] sm:$0xff] %v886
      %vm909 = vcmask 416768
      %910 = vst.msk [vmem:[#allocation4 + $0x10] sm:$0xff] %vm909, %v887
      %911 = vst.msk [vmem:[#allocation4 + $0x18] sm:$0xff] %vm906, %v869
      %912 = vst [vmem:[#allocation4 + $0x20] sm:$0xff] %v888
      %913 = vst.msk [vmem:[#allocation4 + $0x28] sm:$0xff] %vm909, %v889
      %914 = vst.msk [vmem:[#allocation4 + $0x30] sm:$0xff] %vm906, %v875
      %915 = vst [vmem:[#allocation4 + $0x38] sm:$0xff] %v890
      %916 = vst.msk [vmem:[#allocation4 + $0x40] sm:$0xff] %vm909, %v891
      %917 = vst.msk [vmem:[#allocation4 + $0x48] sm:$0xff] %vm906, %v881
      %918 = vst [vmem:[#allocation4 + $0x50] sm:$0xff] %v892
      %919 = vst.msk [vmem:[#allocation4 + $0x58] sm:$0xff] %vm909, %v893
      %920 = vst.msk [vmem:[#allocation4] sm:$0xff] %vm435, 0.0
      %921 = vst.msk [vmem:[#allocation4 + $0x18] sm:$0xff] %vm435, 0.0
      %922 = vst.msk [vmem:[#allocation4 + $0x30] sm:$0xff] %vm435, 0.0
      %923 = vst.msk [vmem:[#allocation4 + $0x48] sm:$0xff] %vm435, 0.0
      %vm924 = vcmask 572816
      %925 = vst.msk [vmem:[#allocation4 + $0x10] sm:$0xff] %vm924, 0.0
      %926 = vst.msk [vmem:[#allocation4 + $0x28] sm:$0xff] %vm924, 0.0
      %927 = vst.msk [vmem:[#allocation4 + $0x40] sm:$0xff] %vm924, 0.0
      %928 = vst.msk [vmem:[#allocation4 + $0x58] sm:$0xff] %vm924, 0.0
      %v929 = vld [vmem:[#allocation4] sm:$0xff]
      %v930 = vld [vmem:[#allocation4 + $0x8] sm:$0xff]
      %v931 = vld [vmem:[#allocation4 + $0x10] sm:$0xff]
      %v932 = vld [vmem:[#allocation4 + $0x18] sm:$0xff]
      %v933 = vld [vmem:[#allocation4 + $0x20] sm:$0xff]
      %v934 = vld [vmem:[#allocation4 + $0x28] sm:$0xff]
      %v935 = vld [vmem:[#allocation4 + $0x30] sm:$0xff]
      %v936 = vld [vmem:[#allocation4 + $0x38] sm:$0xff]
      %v937 = vld [vmem:[#allocation4 + $0x40] sm:$0xff]
      %v938 = vld [vmem:[#allocation4 + $0x48] sm:$0xff]
      %v939 = vld [vmem:[#allocation4 + $0x50] sm:$0xff]
      %v940 = vld [vmem:[#allocation4 + $0x58] sm:$0xff]
      %v941 = vpack.c.bf16 %v932, %v929
      %v942 = vpack.c.bf16 %v933, %v930
      %v943 = vpack.c.bf16 %v934, %v931
      %v944 = vpack.c.bf16 %v938, %v935
      %v945 = vpack.c.bf16 %v939, %v936
      %v946 = vpack.c.bf16 %v940, %v937
      %v947 = vld [vmem:[%s3] sm:$0x1]
      %v950 = vunpack.c.l.s4 1966171168
      %v951 = vunpack.c.0.s8 %v950
      %v952 = vlaneseq
      %v953 = vshrl.u32 %v952, 7
      %v954 = vsub.s32 %v951, %v953
      %v955 = vrot.slane %v947, %v954
      %v957 = vunpack.c.l.s4 1966171168
      %v958 = vunpack.c.0.s8 %v957
      %v959 = vlaneseq
      %v960 = vshrl.u32 %v959, 7
      %v961 = vsub.s32 %v958, %v960
      %v962 = vrot.slane %v955, %v961
      %963 = vrot.lane.b32.xlu0 %v962, 96
      %v964 = vpop.permute.xlu0 %963
      %971 = vrot.lane.b32.xlu0 %v941, 127
      %v972 = vpop.permute.xlu0 %971
      %973 = vrot.lane.b32.xlu0 %v942, 127
      %v974 = vpop.permute.xlu0 %973
      %975 = vrot.lane.b32.xlu0 %v943, 127
      %v976 = vpop.permute.xlu0 %975
      %977 = vrot.lane.b32.xlu0 %v944, 127
      %v978 = vpop.permute.xlu0 %977
      %979 = vrot.lane.b32.xlu0 %v945, 127
      %v980 = vpop.permute.xlu0 %979
      %981 = vrot.lane.b32.xlu0 %v946, 127
      %v982 = vpop.permute.xlu0 %981
      %v983 = vsel %vm488, %v972, %v974
      %v984 = vsel %vm488, %v974, %v976
      %v985 = vsel %vm488, %v978, %v980
      %v986 = vsel %vm488, %v980, %v982
      %v994 = vsel %vm474, %v964, 0
      %996 = vmatprep.subr.bf16.mxu0 %v984
      %997 = vmatpush1.bf16.msra.mxu0 %v983
      %998 = vmatprep.subr.bf16.mxu0 %v986
      %999 = vmatpush1.bf16.msra.mxu0 %v985
      %1000 = vmatprep.subr.bf16.mxu0 0
      %1001 = vmatpush1.bf16.msra.mxu0 0
      %1002 = vmatprep.subr.bf16.mxu0 0
      %1003 = vmatpush1.bf16.msra.mxu0 0
      %1004 = vmatprep.subr.bf16.mxu0 0
      %1005 = vmatpush1.bf16.msra.mxu0 0
      %1006 = vmatprep.subr.bf16.mxu0 0
      %1007 = vmatpush1.bf16.msra.mxu0 0
      %1008 = vmatprep.subr.bf16.mxu0 0
      %1009 = vmatpush1.bf16.msra.mxu0 0
      %1010 = vmatprep.subr.bf16.mxu0 0
      %1011 = vmatpush1.bf16.msra.mxu0 0
      %1012 = vmatprep.subr.bf16.mxu0 0
      %1013 = vmatpush1.bf16.msra.mxu0 0
      %1014 = vmatprep.subr.bf16.mxu0 0
      %1015 = vmatpush1.bf16.msra.mxu0 0
      %1016 = vmatprep.subr.bf16.mxu0 0
      %1017 = vmatpush1.bf16.msra.mxu0 0
      %1018 = vmatprep.subr.bf16.mxu0 0
      %1019 = vmatpush1.bf16.msra.mxu0 0
      %1020 = vmatprep.subr.bf16.mxu0 0
      %1021 = vmatpush1.bf16.msra.mxu0 0
      %1022 = vmatprep.subr.bf16.mxu0 0
      %1023 = vmatpush1.bf16.msra.mxu0 0
      %1024 = vmatprep.subr.bf16.mxu0 0
      %1025 = vmatpush1.bf16.msra.mxu0 0
      %1026 = vmatprep.subr.bf16.mxu0 0
      %1027 = vmatpush1.bf16.msra.mxu0 0
      %1028 = vmatprep.mubr.bf16.mxu0 0
      %1029 = vmatmul.mubr.bf16.gmra.mrb[0].mxu0 %v994
      %v1030 = vpop.f32.mrb[0].mxu0
      %v1031 = vadd.f32 0.0, %v1030
      %v1032 = vpop.f32.mrb[0].mxu0
      %v1033 = vadd.f32 0.0, %v1032
      %v1034 = vpop.f32.mrb[0].mxu0
      %v1035 = vpop.f32.mrb[0].mxu0
      %1036 = vdwg.mxu0
      %1037 = vmatprep.subr.bf16.mxu0 0
      %1038 = vmatpush1.bf16.msra.mxu0 %v976
      %1039 = vmatprep.subr.bf16.mxu0 0
      %1040 = vmatpush1.bf16.msra.mxu0 %v982
      %1041 = vmatprep.subr.bf16.mxu0 0
      %1042 = vmatpush1.bf16.msra.mxu0 0
      %1043 = vmatprep.subr.bf16.mxu0 0
      %1044 = vmatpush1.bf16.msra.mxu0 0
      %1045 = vmatprep.subr.bf16.mxu0 0
      %1046 = vmatpush1.bf16.msra.mxu0 0
      %1047 = vmatprep.subr.bf16.mxu0 0
      %1048 = vmatpush1.bf16.msra.mxu0 0
      %1049 = vmatprep.subr.bf16.mxu0 0
      %1050 = vmatpush1.bf16.msra.mxu0 0
      %1051 = vmatprep.subr.bf16.mxu0 0
      %1052 = vmatpush1.bf16.msra.mxu0 0
      %1053 = vmatprep.subr.bf16.mxu0 0
      %1054 = vmatpush1.bf16.msra.mxu0 0
      %1055 = vmatprep.subr.bf16.mxu0 0
      %1056 = vmatpush1.bf16.msra.mxu0 0
      %1057 = vmatprep.subr.bf16.mxu0 0
      %1058 = vmatpush1.bf16.msra.mxu0 0
      %1059 = vmatprep.subr.bf16.mxu0 0
      %1060 = vmatpush1.bf16.msra.mxu0 0
      %1061 = vmatprep.subr.bf16.mxu0 0
      %1062 = vmatpush1.bf16.msra.mxu0 0
      %1063 = vmatprep.subr.bf16.mxu0 0
      %1064 = vmatpush1.bf16.msra.mxu0 0
      %1065 = vmatprep.subr.bf16.mxu0 0
      %1066 = vmatpush1.bf16.msra.mxu0 0
      %1067 = vmatprep.subr.bf16.mxu0 0
      %1068 = vmatpush1.bf16.msra.mxu0 0
      %1069 = vmatprep.mubr.bf16.mxu0 0
      %1070 = vmatmul.mubr.bf16.gmra.mrb[0].mxu0 %v994
      %v1071 = vpop.f32.mrb[0].mxu0
      %v1072 = vadd.f32 0.0, %v1071
      %v1073 = vpop.f32.mrb[0].mxu0
      %v1074 = vpop.f32.mrb[0].mxu0
      %v1075 = vpop.f32.mrb[0].mxu0
      %1076 = vdwg.mxu0
      %v1078 = vsel %vm474, %v947, 0
      %1080 = vmatprep.subr.bf16.mxu0 %v942
      %1081 = vmatpush1.bf16.msra.mxu0 %v941
      %1082 = vmatprep.subr.bf16.mxu0 %v945
      %1083 = vmatpush1.bf16.msra.mxu0 %v944
      %1084 = vmatprep.subr.bf16.mxu0 0
      %1085 = vmatpush1.bf16.msra.mxu0 0
      %1086 = vmatprep.subr.bf16.mxu0 0
      %1087 = vmatpush1.bf16.msra.mxu0 0
      %1088 = vmatprep.subr.bf16.mxu0 0
      %1089 = vmatpush1.bf16.msra.mxu0 0
      %1090 = vmatprep.subr.bf16.mxu0 0
      %1091 = vmatpush1.bf16.msra.mxu0 0
      %1092 = vmatprep.subr.bf16.mxu0 0
      %1093 = vmatpush1.bf16.msra.mxu0 0
      %1094 = vmatprep.subr.bf16.mxu0 0
      %1095 = vmatpush1.bf16.msra.mxu0 0
      %1096 = vmatprep.subr.bf16.mxu0 0
      %1097 = vmatpush1.bf16.msra.mxu0 0
      %1098 = vmatprep.subr.bf16.mxu0 0
      %1099 = vmatpush1.bf16.msra.mxu0 0
      %1100 = vmatprep.subr.bf16.mxu0 0
      %1101 = vmatpush1.bf16.msra.mxu0 0
      %1102 = vmatprep.subr.bf16.mxu0 0
      %1103 = vmatpush1.bf16.msra.mxu0 0
      %1104 = vmatprep.subr.bf16.mxu0 0
      %1105 = vmatpush1.bf16.msra.mxu0 0
      %1106 = vmatprep.subr.bf16.mxu0 0
      %1107 = vmatpush1.bf16.msra.mxu0 0
      %1108 = vmatprep.subr.bf16.mxu0 0
      %1109 = vmatpush1.bf16.msra.mxu0 0
      %1110 = vmatprep.subr.bf16.mxu0 0
      %1111 = vmatpush1.bf16.msra.mxu0 0
      %1112 = vmatprep.mubr.bf16.mxu0 0
      %1113 = vmatmul.mubr.bf16.gmra.mrb[0].mxu0 %v1078
      %v1114 = vpop.f32.mrb[0].mxu0
      %v1115 = vadd.f32 %v1031, %v1114
      %v1116 = vpop.f32.mrb[0].mxu0
      %v1117 = vadd.f32 %v1033, %v1116
      %v1118 = vpop.f32.mrb[0].mxu0
      %v1119 = vpop.f32.mrb[0].mxu0
      %1120 = vdwg.mxu0
      %1121 = vmatprep.subr.bf16.mxu0 0
      %1122 = vmatpush1.bf16.msra.mxu0 %v943
      %1123 = vmatprep.subr.bf16.mxu0 0
      %1124 = vmatpush1.bf16.msra.mxu0 %v946
      %1125 = vmatprep.subr.bf16.mxu0 0
      %1126 = vmatpush1.bf16.msra.mxu0 0
      %1127 = vmatprep.subr.bf16.mxu0 0
      %1128 = vmatpush1.bf16.msra.mxu0 0
      %1129 = vmatprep.subr.bf16.mxu0 0
      %1130 = vmatpush1.bf16.msra.mxu0 0
      %1131 = vmatprep.subr.bf16.mxu0 0
      %1132 = vmatpush1.bf16.msra.mxu0 0
      %1133 = vmatprep.subr.bf16.mxu0 0
      %1134 = vmatpush1.bf16.msra.mxu0 0
      %1135 = vmatprep.subr.bf16.mxu0 0
      %1136 = vmatpush1.bf16.msra.mxu0 0
      %1137 = vmatprep.subr.bf16.mxu0 0
      %1138 = vmatpush1.bf16.msra.mxu0 0
      %1139 = vmatprep.subr.bf16.mxu0 0
      %1140 = vmatpush1.bf16.msra.mxu0 0
      %1141 = vmatprep.subr.bf16.mxu0 0
      %1142 = vmatpush1.bf16.msra.mxu0 0
      %1143 = vmatprep.subr.bf16.mxu0 0
      %1144 = vmatpush1.bf16.msra.mxu0 0
      %1145 = vmatprep.subr.bf16.mxu0 0
      %1146 = vmatpush1.bf16.msra.mxu0 0
      %1147 = vmatprep.subr.bf16.mxu0 0
      %1148 = vmatpush1.bf16.msra.mxu0 0
      %1149 = vmatprep.subr.bf16.mxu0 0
      %1150 = vmatpush1.bf16.msra.mxu0 0
      %1151 = vmatprep.subr.bf16.mxu0 0
      %1152 = vmatpush1.bf16.msra.mxu0 0
      %1153 = vmatprep.mubr.bf16.mxu0 0
      %1154 = vmatmul.mubr.bf16.gmra.mrb[0].mxu0 %v1078
      %v1155 = vpop.f32.mrb[0].mxu0
      %v1156 = vadd.f32 %v1072, %v1155
      %v1157 = vpop.f32.mrb[0].mxu0
      %v1158 = vpop.f32.mrb[0].mxu0
      %v1159 = vpop.f32.mrb[0].mxu0
      %1160 = vdwg.mxu0
      %v1161 = vld [vmem:[#allocation4] sm:$0xff]
      %v1162 = vld [vmem:[#allocation4 + $0x8] sm:$0xff]
      %v1163 = vld [vmem:[#allocation4 + $0x10] sm:$0xff]
      %v1164 = vld [vmem:[#allocation4 + $0x18] sm:$0xff]
      %v1165 = vld [vmem:[#allocation4 + $0x20] sm:$0xff]
      %v1166 = vld [vmem:[#allocation4 + $0x28] sm:$0xff]
      %v1167 = vld [vmem:[#allocation4 + $0x30] sm:$0xff]
      %v1168 = vld [vmem:[#allocation4 + $0x38] sm:$0xff]
      %v1169 = vld [vmem:[#allocation4 + $0x40] sm:$0xff]
      %v1170 = vld [vmem:[#allocation4 + $0x48] sm:$0xff]
      %v1171 = vld [vmem:[#allocation4 + $0x50] sm:$0xff]
      %v1172 = vld [vmem:[#allocation4 + $0x58] sm:$0xff]
      %v1173 = vpack.c.bf16 %v1164, %v1161
      %v1174 = vpack.c.bf16 %v1165, %v1162
      %v1175 = vpack.c.bf16 %v1166, %v1163
      %v1176 = vpack.c.bf16 %v1170, %v1167
      %v1177 = vpack.c.bf16 %v1171, %v1168
      %v1178 = vpack.c.bf16 %v1172, %v1169
      %v1179 = vld [vmem:[%s3] sm:$0x1]
      %v1182 = vunpack.c.l.s4 1966171168
      %v1183 = vunpack.c.0.s8 %v1182
      %v1184 = vlaneseq
      %v1185 = vshrl.u32 %v1184, 7
      %v1186 = vsub.s32 %v1183, %v1185
      %v1187 = vrot.slane %v1179, %v1186
      %v1189 = vunpack.c.l.s4 1966171168
      %v1190 = vunpack.c.0.s8 %v1189
      %v1191 = vlaneseq
      %v1192 = vshrl.u32 %v1191, 7
      %v1193 = vsub.s32 %v1190, %v1192
      %v1194 = vrot.slane %v1187, %v1193
      %1195 = vrot.lane.b32.xlu0 %v1194, 64
      %v1196 = vpop.permute.xlu0 %1195
      %1203 = vrot.lane.b32.xlu0 %v1173, 126
      %v1204 = vpop.permute.xlu0 %1203
      %1205 = vrot.lane.b32.xlu0 %v1174, 126
      %v1206 = vpop.permute.xlu0 %1205
      %1207 = vrot.lane.b32.xlu0 %v1175, 126
      %v1208 = vpop.permute.xlu0 %1207
      %1209 = vrot.lane.b32.xlu0 %v1176, 126
      %v1210 = vpop.permute.xlu0 %1209
      %1211 = vrot.lane.b32.xlu0 %v1177, 126
      %v1212 = vpop.permute.xlu0 %1211
      %1213 = vrot.lane.b32.xlu0 %v1178, 126
      %v1214 = vpop.permute.xlu0 %1213
      %v1215 = vsel %vm509, %v1204, %v1206
      %v1216 = vsel %vm509, %v1206, %v1208
      %v1217 = vsel %vm509, %v1210, %v1212
      %v1218 = vsel %vm509, %v1212, %v1214
      %v1226 = vsel %vm474, %v1196, 0
      %1228 = vmatprep.subr.bf16.mxu0 %v1216
      %1229 = vmatpush1.bf16.msra.mxu0 %v1215
      %1230 = vmatprep.subr.bf16.mxu0 %v1218
      %1231 = vmatpush1.bf16.msra.mxu0 %v1217
      %1232 = vmatprep.subr.bf16.mxu0 0
      %1233 = vmatpush1.bf16.msra.mxu0 0
      %1234 = vmatprep.subr.bf16.mxu0 0
      %1235 = vmatpush1.bf16.msra.mxu0 0
      %1236 = vmatprep.subr.bf16.mxu0 0
      %1237 = vmatpush1.bf16.msra.mxu0 0
      %1238 = vmatprep.subr.bf16.mxu0 0
      %1239 = vmatpush1.bf16.msra.mxu0 0
      %1240 = vmatprep.subr.bf16.mxu0 0
      %1241 = vmatpush1.bf16.msra.mxu0 0
      %1242 = vmatprep.subr.bf16.mxu0 0
      %1243 = vmatpush1.bf16.msra.mxu0 0
      %1244 = vmatprep.subr.bf16.mxu0 0
      %1245 = vmatpush1.bf16.msra.mxu0 0
      %1246 = vmatprep.subr.bf16.mxu0 0
      %1247 = vmatpush1.bf16.msra.mxu0 0
      %1248 = vmatprep.subr.bf16.mxu0 0
      %1249 = vmatpush1.bf16.msra.mxu0 0
      %1250 = vmatprep.subr.bf16.mxu0 0
      %1251 = vmatpush1.bf16.msra.mxu0 0
      %1252 = vmatprep.subr.bf16.mxu0 0
      %1253 = vmatpush1.bf16.msra.mxu0 0
      %1254 = vmatprep.subr.bf16.mxu0 0
      %1255 = vmatpush1.bf16.msra.mxu0 0
      %1256 = vmatprep.subr.bf16.mxu0 0
      %1257 = vmatpush1.bf16.msra.mxu0 0
      %1258 = vmatprep.subr.bf16.mxu0 0
      %1259 = vmatpush1.bf16.msra.mxu0 0
      %1260 = vmatprep.mubr.bf16.mxu0 0
      %1261 = vmatmul.mubr.bf16.gmra.mrb[0].mxu0 %v1226
      %v1262 = vpop.f32.mrb[0].mxu0
      %v1263 = vadd.f32 0.0, %v1262
      %v1264 = vpop.f32.mrb[0].mxu0
      %v1265 = vadd.f32 0.0, %v1264
      %v1266 = vpop.f32.mrb[0].mxu0
      %v1267 = vpop.f32.mrb[0].mxu0
      %1268 = vdwg.mxu0
      %1269 = vmatprep.subr.bf16.mxu0 0
      %1270 = vmatpush1.bf16.msra.mxu0 %v1208
      %1271 = vmatprep.subr.bf16.mxu0 0
      %1272 = vmatpush1.bf16.msra.mxu0 %v1214
      %1273 = vmatprep.subr.bf16.mxu0 0
      %1274 = vmatpush1.bf16.msra.mxu0 0
      %1275 = vmatprep.subr.bf16.mxu0 0
      %1276 = vmatpush1.bf16.msra.mxu0 0
      %1277 = vmatprep.subr.bf16.mxu0 0
      %1278 = vmatpush1.bf16.msra.mxu0 0
      %1279 = vmatprep.subr.bf16.mxu0 0
      %1280 = vmatpush1.bf16.msra.mxu0 0
      %1281 = vmatprep.subr.bf16.mxu0 0
      %1282 = vmatpush1.bf16.msra.mxu0 0
      %1283 = vmatprep.subr.bf16.mxu0 0
      %1284 = vmatpush1.bf16.msra.mxu0 0
      %1285 = vmatprep.subr.bf16.mxu0 0
      %1286 = vmatpush1.bf16.msra.mxu0 0
      %1287 = vmatprep.subr.bf16.mxu0 0
      %1288 = vmatpush1.bf16.msra.mxu0 0
      %1289 = vmatprep.subr.bf16.mxu0 0
      %1290 = vmatpush1.bf16.msra.mxu0 0
      %1291 = vmatprep.subr.bf16.mxu0 0
      %1292 = vmatpush1.bf16.msra.mxu0 0
      %1293 = vmatprep.subr.bf16.mxu0 0
      %1294 = vmatpush1.bf16.msra.mxu0 0
      %1295 = vmatprep.subr.bf16.mxu0 0
      %1296 = vmatpush1.bf16.msra.mxu0 0
      %1297 = vmatprep.subr.bf16.mxu0 0
      %1298 = vmatpush1.bf16.msra.mxu0 0
      %1299 = vmatprep.subr.bf16.mxu0 0
      %1300 = vmatpush1.bf16.msra.mxu0 0
      %1301 = vmatprep.mubr.bf16.mxu0 0
      %1302 = vmatmul.mubr.bf16.gmra.mrb[0].mxu0 %v1226
      %v1303 = vpop.f32.mrb[0].mxu0
      %v1304 = vadd.f32 0.0, %v1303
      %v1305 = vpop.f32.mrb[0].mxu0
      %v1306 = vpop.f32.mrb[0].mxu0
      %v1307 = vpop.f32.mrb[0].mxu0
      %1308 = vdwg.mxu0
      %v1309 = vadd.f32 %v1115, %v1263
      %v1310 = vadd.f32 %v1117, %v1265
      %v1311 = vadd.f32 %v1156, %v1304
      %v1312 = vld [vmem:[#allocation4] sm:$0xff]
      %v1313 = vld [vmem:[#allocation4 + $0x8] sm:$0xff]
      %v1314 = vld [vmem:[#allocation4 + $0x10] sm:$0xff]
      %v1315 = vld [vmem:[#allocation4 + $0x18] sm:$0xff]
      %v1316 = vld [vmem:[#allocation4 + $0x20] sm:$0xff]
      %v1317 = vld [vmem:[#allocation4 + $0x28] sm:$0xff]
      %v1318 = vld [vmem:[#allocation4 + $0x30] sm:$0xff]
      %v1319 = vld [vmem:[#allocation4 + $0x38] sm:$0xff]
      %v1320 = vld [vmem:[#allocation4 + $0x40] sm:$0xff]
      %v1321 = vld [vmem:[#allocation4 + $0x48] sm:$0xff]
      %v1322 = vld [vmem:[#allocation4 + $0x50] sm:$0xff]
      %v1323 = vld [vmem:[#allocation4 + $0x58] sm:$0xff]
      %v1324 = vpack.c.bf16 %v1315, %v1312
      %v1325 = vpack.c.bf16 %v1316, %v1313
      %v1326 = vpack.c.bf16 %v1317, %v1314
      %v1327 = vpack.c.bf16 %v1321, %v1318
      %v1328 = vpack.c.bf16 %v1322, %v1319
      %v1329 = vpack.c.bf16 %v1323, %v1320
      %v1330 = vld [vmem:[%s3] sm:$0x1]
      %v1333 = vunpack.c.l.s4 1966171168
      %v1334 = vunpack.c.0.s8 %v1333
      %v1335 = vlaneseq
      %v1336 = vshrl.u32 %v1335, 7
      %v1337 = vsub.s32 %v1334, %v1336
      %v1338 = vrot.slane %v1330, %v1337
      %v1340 = vunpack.c.l.s4 1966171168
      %v1341 = vunpack.c.0.s8 %v1340
      %v1342 = vlaneseq
      %v1343 = vshrl.u32 %v1342, 7
      %v1344 = vsub.s32 %v1341, %v1343
      %v1345 = vrot.slane %v1338, %v1344
      %1346 = vrot.lane.b32.xlu0 %v1345, 32
      %v1347 = vpop.permute.xlu0 %1346
      %1354 = vrot.lane.b32.xlu0 %v1324, 110
      %v1355 = vpop.permute.xlu0 %1354
      %1356 = vrot.lane.b32.xlu0 %v1325, 110
      %v1357 = vpop.permute.xlu0 %1356
      %1358 = vrot.lane.b32.xlu0 %v1326, 110
      %v1359 = vpop.permute.xlu0 %1358
      %1360 = vrot.lane.b32.xlu0 %v1327, 110
      %v1361 = vpop.permute.xlu0 %1360
      %1362 = vrot.lane.b32.xlu0 %v1328, 110
      %v1363 = vpop.permute.xlu0 %1362
      %1364 = vrot.lane.b32.xlu0 %v1329, 110
      %v1365 = vpop.permute.xlu0 %1364
      %v1366 = vsel %vm530, %v1355, %v1357
      %v1367 = vsel %vm530, %v1357, %v1359
      %v1368 = vsel %vm530, %v1361, %v1363
      %v1369 = vsel %vm530, %v1363, %v1365
      %v1377 = vsel %vm474, %v1347, 0
      %1379 = vmatprep.subr.bf16.mxu0 %v1367
      %1380 = vmatpush1.bf16.msra.mxu0 %v1366
      %1381 = vmatprep.subr.bf16.mxu0 %v1369
      %1382 = vmatpush1.bf16.msra.mxu0 %v1368
      %1383 = vmatprep.subr.bf16.mxu0 0
      %1384 = vmatpush1.bf16.msra.mxu0 0
      %1385 = vmatprep.subr.bf16.mxu0 0
      %1386 = vmatpush1.bf16.msra.mxu0 0
      %1387 = vmatprep.subr.bf16.mxu0 0
      %1388 = vmatpush1.bf16.msra.mxu0 0
      %1389 = vmatprep.subr.bf16.mxu0 0
      %1390 = vmatpush1.bf16.msra.mxu0 0
      %1391 = vmatprep.subr.bf16.mxu0 0
      %1392 = vmatpush1.bf16.msra.mxu0 0
      %1393 = vmatprep.subr.bf16.mxu0 0
      %1394 = vmatpush1.bf16.msra.mxu0 0
      %1395 = vmatprep.subr.bf16.mxu0 0
      %1396 = vmatpush1.bf16.msra.mxu0 0
      %1397 = vmatprep.subr.bf16.mxu0 0
      %1398 = vmatpush1.bf16.msra.mxu0 0
      %1399 = vmatprep.subr.bf16.mxu0 0
      %1400 = vmatpush1.bf16.msra.mxu0 0
      %1401 = vmatprep.subr.bf16.mxu0 0
      %1402 = vmatpush1.bf16.msra.mxu0 0
      %1403 = vmatprep.subr.bf16.mxu0 0
      %1404 = vmatpush1.bf16.msra.mxu0 0
      %1405 = vmatprep.subr.bf16.mxu0 0
      %1406 = vmatpush1.bf16.msra.mxu0 0
      %1407 = vmatprep.subr.bf16.mxu0 0
      %1408 = vmatpush1.bf16.msra.mxu0 0
      %1409 = vmatprep.subr.bf16.mxu0 0
      %1410 = vmatpush1.bf16.msra.mxu0 0
      %1411 = vmatprep.mubr.bf16.mxu0 0
      %1412 = vmatmul.mubr.bf16.gmra.mrb[0].mxu0 %v1377
      %v1413 = vpop.f32.mrb[0].mxu0
      %v1414 = vadd.f32 0.0, %v1413
      %v1415 = vpop.f32.mrb[0].mxu0
      %v1416 = vadd.f32 0.0, %v1415
      %v1417 = vpop.f32.mrb[0].mxu0
      %v1418 = vpop.f32.mrb[0].mxu0
      %1419 = vdwg.mxu0
      %1420 = vmatprep.subr.bf16.mxu0 0
      %1421 = vmatpush1.bf16.msra.mxu0 %v1359
      %1422 = vmatprep.subr.bf16.mxu0 0
      %1423 = vmatpush1.bf16.msra.mxu0 %v1365
      %1424 = vmatprep.subr.bf16.mxu0 0
      %1425 = vmatpush1.bf16.msra.mxu0 0
      %1426 = vmatprep.subr.bf16.mxu0 0
      %1427 = vmatpush1.bf16.msra.mxu0 0
      %1428 = vmatprep.subr.bf16.mxu0 0
      %1429 = vmatpush1.bf16.msra.mxu0 0
      %1430 = vmatprep.subr.bf16.mxu0 0
      %1431 = vmatpush1.bf16.msra.mxu0 0
      %1432 = vmatprep.subr.bf16.mxu0 0
      %1433 = vmatpush1.bf16.msra.mxu0 0
      %1434 = vmatprep.subr.bf16.mxu0 0
      %1435 = vmatpush1.bf16.msra.mxu0 0
      %1436 = vmatprep.subr.bf16.mxu0 0
      %1437 = vmatpush1.bf16.msra.mxu0 0
      %1438 = vmatprep.subr.bf16.mxu0 0
      %1439 = vmatpush1.bf16.msra.mxu0 0
      %1440 = vmatprep.subr.bf16.mxu0 0
      %1441 = vmatpush1.bf16.msra.mxu0 0
      %1442 = vmatprep.subr.bf16.mxu0 0
      %1443 = vmatpush1.bf16.msra.mxu0 0
      %1444 = vmatprep.subr.bf16.mxu0 0
      %1445 = vmatpush1.bf16.msra.mxu0 0
      %1446 = vmatprep.subr.bf16.mxu0 0
      %1447 = vmatpush1.bf16.msra.mxu0 0
      %1448 = vmatprep.subr.bf16.mxu0 0
      %1449 = vmatpush1.bf16.msra.mxu0 0
      %1450 = vmatprep.subr.bf16.mxu0 0
      %1451 = vmatpush1.bf16.msra.mxu0 0
      %1452 = vmatprep.mubr.bf16.mxu0 0
      %1453 = vmatmul.mubr.bf16.gmra.mrb[0].mxu0 %v1377
      %v1454 = vpop.f32.mrb[0].mxu0
      %v1455 = vadd.f32 0.0, %v1454
      %v1456 = vpop.f32.mrb[0].mxu0
      %v1457 = vpop.f32.mrb[0].mxu0
      %v1458 = vpop.f32.mrb[0].mxu0
      %1459 = vdwg.mxu0
      %v1460 = vadd.f32 %v1309, %v1414
      %v1461 = vadd.f32 %v1310, %v1416
      %v1462 = vadd.f32 %v1311, %v1455
      %v1463 = vld [vmem:[#allocation4] sm:$0xff]
      %v1464 = vld [vmem:[#allocation4 + $0x8] sm:$0xff]
      %v1465 = vld [vmem:[#allocation4 + $0x10] sm:$0xff]
      %v1466 = vld [vmem:[#allocation4 + $0x18] sm:$0xff]
      %v1467 = vld [vmem:[#allocation4 + $0x20] sm:$0xff]
      %v1468 = vld [vmem:[#allocation4 + $0x28] sm:$0xff]
      %v1469 = vld [vmem:[#allocation4 + $0x30] sm:$0xff]
      %v1470 = vld [vmem:[#allocation4 + $0x38] sm:$0xff]
      %v1471 = vld [vmem:[#allocation4 + $0x40] sm:$0xff]
      %v1472 = vld [vmem:[#allocation4 + $0x48] sm:$0xff]
      %v1473 = vld [vmem:[#allocation4 + $0x50] sm:$0xff]
      %v1474 = vld [vmem:[#allocation4 + $0x58] sm:$0xff]
      %v1475 = vpack.c.bf16 %v1466, %v1463
      %v1476 = vpack.c.bf16 %v1467, %v1464
      %v1477 = vpack.c.bf16 %v1468, %v1465
      %v1478 = vpack.c.bf16 %v1472, %v1469
      %v1479 = vpack.c.bf16 %v1473, %v1470
      %v1480 = vpack.c.bf16 %v1474, %v1471
      %v1481 = vld [vmem:[%s3 + $0x1] sm:$0x1]
      %1488 = vrot.lane.b32.xlu0 %v1475, 109
      %v1489 = vpop.permute.xlu0 %1488
      %1490 = vrot.lane.b32.xlu0 %v1476, 109
      %v1491 = vpop.permute.xlu0 %1490
      %1492 = vrot.lane.b32.xlu0 %v1477, 109
      %v1493 = vpop.permute.xlu0 %1492
      %1494 = vrot.lane.b32.xlu0 %v1478, 109
      %v1495 = vpop.permute.xlu0 %1494
      %1496 = vrot.lane.b32.xlu0 %v1479, 109
      %v1497 = vpop.permute.xlu0 %1496
      %1498 = vrot.lane.b32.xlu0 %v1480, 109
      %v1499 = vpop.permute.xlu0 %1498
      %v1500 = vsel %vm551, %v1489, %v1491
      %v1501 = vsel %vm551, %v1491, %v1493
      %v1502 = vsel %vm551, %v1495, %v1497
      %v1503 = vsel %vm551, %v1497, %v1499
      %v1511 = vsel %vm474, %v1481, 0
      %1513 = vmatprep.subr.bf16.mxu0 %v1501
      %1514 = vmatpush1.bf16.msra.mxu0 %v1500
      %1515 = vmatprep.subr.bf16.mxu0 %v1503
      %1516 = vmatpush1.bf16.msra.mxu0 %v1502
      %1517 = vmatprep.subr.bf16.mxu0 0
      %1518 = vmatpush1.bf16.msra.mxu0 0
      %1519 = vmatprep.subr.bf16.mxu0 0
      %1520 = vmatpush1.bf16.msra.mxu0 0
      %1521 = vmatprep.subr.bf16.mxu0 0
      %1522 = vmatpush1.bf16.msra.mxu0 0
      %1523 = vmatprep.subr.bf16.mxu0 0
      %1524 = vmatpush1.bf16.msra.mxu0 0
      %1525 = vmatprep.subr.bf16.mxu0 0
      %1526 = vmatpush1.bf16.msra.mxu0 0
      %1527 = vmatprep.subr.bf16.mxu0 0
      %1528 = vmatpush1.bf16.msra.mxu0 0
      %1529 = vmatprep.subr.bf16.mxu0 0
      %1530 = vmatpush1.bf16.msra.mxu0 0
      %1531 = vmatprep.subr.bf16.mxu0 0
      %1532 = vmatpush1.bf16.msra.mxu0 0
      %1533 = vmatprep.subr.bf16.mxu0 0
      %1534 = vmatpush1.bf16.msra.mxu0 0
      %1535 = vmatprep.subr.bf16.mxu0 0
      %1536 = vmatpush1.bf16.msra.mxu0 0
      %1537 = vmatprep.subr.bf16.mxu0 0
      %1538 = vmatpush1.bf16.msra.mxu0 0
      %1539 = vmatprep.subr.bf16.mxu0 0
      %1540 = vmatpush1.bf16.msra.mxu0 0
      %1541 = vmatprep.subr.bf16.mxu0 0
      %1542 = vmatpush1.bf16.msra.mxu0 0
      %1543 = vmatprep.subr.bf16.mxu0 0
      %1544 = vmatpush1.bf16.msra.mxu0 0
      %1545 = vmatprep.mubr.bf16.mxu0 0
      %1546 = vmatmul.mubr.bf16.gmra.mrb[0].mxu0 %v1511
      %v1547 = vpop.f32.mrb[0].mxu0
      %v1548 = vadd.f32 0.0, %v1547
      %v1549 = vpop.f32.mrb[0].mxu0
      %v1550 = vadd.f32 0.0, %v1549
      %v1551 = vpop.f32.mrb[0].mxu0
      %v1552 = vpop.f32.mrb[0].mxu0
      %1553 = vdwg.mxu0
      %1554 = vmatprep.subr.bf16.mxu0 0
      %1555 = vmatpush1.bf16.msra.mxu0 %v1493
      %1556 = vmatprep.subr.bf16.mxu0 0
      %1557 = vmatpush1.bf16.msra.mxu0 %v1499
      %1558 = vmatprep.subr.bf16.mxu0 0
      %1559 = vmatpush1.bf16.msra.mxu0 0
      %1560 = vmatprep.subr.bf16.mxu0 0
      %1561 = vmatpush1.bf16.msra.mxu0 0
      %1562 = vmatprep.subr.bf16.mxu0 0
      %1563 = vmatpush1.bf16.msra.mxu0 0
      %1564 = vmatprep.subr.bf16.mxu0 0
      %1565 = vmatpush1.bf16.msra.mxu0 0
      %1566 = vmatprep.subr.bf16.mxu0 0
      %1567 = vmatpush1.bf16.msra.mxu0 0
      %1568 = vmatprep.subr.bf16.mxu0 0
      %1569 = vmatpush1.bf16.msra.mxu0 0
      %1570 = vmatprep.subr.bf16.mxu0 0
      %1571 = vmatpush1.bf16.msra.mxu0 0
      %1572 = vmatprep.subr.bf16.mxu0 0
      %1573 = vmatpush1.bf16.msra.mxu0 0
      %1574 = vmatprep.subr.bf16.mxu0 0
      %1575 = vmatpush1.bf16.msra.mxu0 0
      %1576 = vmatprep.subr.bf16.mxu0 0
      %1577 = vmatpush1.bf16.msra.mxu0 0
      %1578 = vmatprep.subr.bf16.mxu0 0
      %1579 = vmatpush1.bf16.msra.mxu0 0
      %1580 = vmatprep.subr.bf16.mxu0 0
      %1581 = vmatpush1.bf16.msra.mxu0 0
      %1582 = vmatprep.subr.bf16.mxu0 0
      %1583 = vmatpush1.bf16.msra.mxu0 0
      %1584 = vmatprep.subr.bf16.mxu0 0
      %1585 = vmatpush1.bf16.msra.mxu0 0
      %1586 = vmatprep.mubr.bf16.mxu0 0
      %1587 = vmatmul.mubr.bf16.gmra.mrb[0].mxu0 %v1511
      %v1588 = vpop.f32.mrb[0].mxu0
      %v1589 = vadd.f32 0.0, %v1588
      %v1590 = vpop.f32.mrb[0].mxu0
      %v1591 = vpop.f32.mrb[0].mxu0
      %v1592 = vpop.f32.mrb[0].mxu0
      %1593 = vdwg.mxu0
      %v1594 = vadd.f32 %v1460, %v1548
      %v1595 = vadd.f32 %v1461, %v1550
      %v1596 = vadd.f32 %v1462, %v1589
      %v1599 = vunpack.c.l.s4 1966171168
      %v1600 = vunpack.c.0.s8 %v1599
      %v1601 = vlaneseq
      %v1602 = vshrl.u32 %v1601, 7
      %v1603 = vsub.s32 %v1600, %v1602
      %v1604 = vrot.slane %v1481, %v1603
      %v1606 = vunpack.c.l.s4 1966171168
      %v1607 = vunpack.c.0.s8 %v1606
      %v1608 = vlaneseq
      %v1609 = vshrl.u32 %v1608, 7
      %v1610 = vsub.s32 %v1607, %v1609
      %v1611 = vrot.slane %v1604, %v1610
      %1612 = vrot.lane.b32.xlu0 %v1611, 96
      %v1613 = vpop.permute.xlu0 %1612
      %1614 = vrot.lane.b32.xlu0 %v1475, 108
      %v1615 = vpop.permute.xlu0 %1614
      %1616 = vrot.lane.b32.xlu0 %v1476, 108
      %v1617 = vpop.permute.xlu0 %1616
      %1618 = vrot.lane.b32.xlu0 %v1477, 108
      %v1619 = vpop.permute.xlu0 %1618
      %1620 = vrot.lane.b32.xlu0 %v1478, 108
      %v1621 = vpop.permute.xlu0 %1620
      %1622 = vrot.lane.b32.xlu0 %v1479, 108
      %v1623 = vpop.permute.xlu0 %1622
      %1624 = vrot.lane.b32.xlu0 %v1480, 108
      %v1625 = vpop.permute.xlu0 %1624
      %v1626 = vsel %vm572, %v1615, %v1617
      %v1627 = vsel %vm572, %v1617, %v1619
      %v1628 = vsel %vm572, %v1621, %v1623
      %v1629 = vsel %vm572, %v1623, %v1625
      %v1637 = vsel %vm474, %v1613, 0
      %1639 = vmatprep.subr.bf16.mxu0 %v1627
      %1640 = vmatpush1.bf16.msra.mxu0 %v1626
      %1641 = vmatprep.subr.bf16.mxu0 %v1629
      %1642 = vmatpush1.bf16.msra.mxu0 %v1628
      %1643 = vmatprep.subr.bf16.mxu0 0
      %1644 = vmatpush1.bf16.msra.mxu0 0
      %1645 = vmatprep.subr.bf16.mxu0 0
      %1646 = vmatpush1.bf16.msra.mxu0 0
      %1647 = vmatprep.subr.bf16.mxu0 0
      %1648 = vmatpush1.bf16.msra.mxu0 0
      %1649 = vmatprep.subr.bf16.mxu0 0
      %1650 = vmatpush1.bf16.msra.mxu0 0
      %1651 = vmatprep.subr.bf16.mxu0 0
      %1652 = vmatpush1.bf16.msra.mxu0 0
      %1653 = vmatprep.subr.bf16.mxu0 0
      %1654 = vmatpush1.bf16.msra.mxu0 0
      %1655 = vmatprep.subr.bf16.mxu0 0
      %1656 = vmatpush1.bf16.msra.mxu0 0
      %1657 = vmatprep.subr.bf16.mxu0 0
      %1658 = vmatpush1.bf16.msra.mxu0 0
      %1659 = vmatprep.subr.bf16.mxu0 0
      %1660 = vmatpush1.bf16.msra.mxu0 0
      %1661 = vmatprep.subr.bf16.mxu0 0
      %1662 = vmatpush1.bf16.msra.mxu0 0
      %1663 = vmatprep.subr.bf16.mxu0 0
      %1664 = vmatpush1.bf16.msra.mxu0 0
      %1665 = vmatprep.subr.bf16.mxu0 0
      %1666 = vmatpush1.bf16.msra.mxu0 0
      %1667 = vmatprep.subr.bf16.mxu0 0
      %1668 = vmatpush1.bf16.msra.mxu0 0
      %1669 = vmatprep.subr.bf16.mxu0 0
      %1670 = vmatpush1.bf16.msra.mxu0 0
      %1671 = vmatprep.mubr.bf16.mxu0 0
      %1672 = vmatmul.mubr.bf16.gmra.mrb[0].mxu0 %v1637
      %v1673 = vpop.f32.mrb[0].mxu0
      %v1674 = vadd.f32 0.0, %v1673
      %v1675 = vpop.f32.mrb[0].mxu0
      %v1676 = vadd.f32 0.0, %v1675
      %v1677 = vpop.f32.mrb[0].mxu0
      %v1678 = vpop.f32.mrb[0].mxu0
      %1679 = vdwg.mxu0
      %1680 = vmatprep.subr.bf16.mxu0 0
      %1681 = vmatpush1.bf16.msra.mxu0 %v1619
      %1682 = vmatprep.subr.bf16.mxu0 0
      %1683 = vmatpush1.bf16.msra.mxu0 %v1625
      %1684 = vmatprep.subr.bf16.mxu0 0
      %1685 = vmatpush1.bf16.msra.mxu0 0
      %1686 = vmatprep.subr.bf16.mxu0 0
      %1687 = vmatpush1.bf16.msra.mxu0 0
      %1688 = vmatprep.subr.bf16.mxu0 0
      %1689 = vmatpush1.bf16.msra.mxu0 0
      %1690 = vmatprep.subr.bf16.mxu0 0
      %1691 = vmatpush1.bf16.msra.mxu0 0
      %1692 = vmatprep.subr.bf16.mxu0 0
      %1693 = vmatpush1.bf16.msra.mxu0 0
      %1694 = vmatprep.subr.bf16.mxu0 0
      %1695 = vmatpush1.bf16.msra.mxu0 0
      %1696 = vmatprep.subr.bf16.mxu0 0
      %1697 = vmatpush1.bf16.msra.mxu0 0
      %1698 = vmatprep.subr.bf16.mxu0 0
      %1699 = vmatpush1.bf16.msra.mxu0 0
      %1700 = vmatprep.subr.bf16.mxu0 0
      %1701 = vmatpush1.bf16.msra.mxu0 0
      %1702 = vmatprep.subr.bf16.mxu0 0
      %1703 = vmatpush1.bf16.msra.mxu0 0
      %1704 = vmatprep.subr.bf16.mxu0 0
      %1705 = vmatpush1.bf16.msra.mxu0 0
      %1706 = vmatprep.subr.bf16.mxu0 0
      %1707 = vmatpush1.bf16.msra.mxu0 0
      %1708 = vmatprep.subr.bf16.mxu0 0
      %1709 = vmatpush1.bf16.msra.mxu0 0
      %1710 = vmatprep.subr.bf16.mxu0 0
      %1711 = vmatpush1.bf16.msra.mxu0 0
      %1712 = vmatprep.mubr.bf16.mxu0 0
      %1713 = vmatmul.mubr.bf16.gmra.mrb[0].mxu0 %v1637
      %v1714 = vpop.f32.mrb[0].mxu0
      %v1715 = vadd.f32 0.0, %v1714
      %v1716 = vpop.f32.mrb[0].mxu0
      %v1717 = vpop.f32.mrb[0].mxu0
      %v1718 = vpop.f32.mrb[0].mxu0
      %1719 = vdwg.mxu0
      %v1720 = vadd.f32 %v1594, %v1674
      %v1721 = vadd.f32 %v1595, %v1676
      %v1722 = vadd.f32 %v1596, %v1715
      %v1723 = vld [vmem:[#allocation4] sm:$0xff]
      %v1724 = vld [vmem:[#allocation4 + $0x8] sm:$0xff]
      %v1725 = vld [vmem:[#allocation4 + $0x10] sm:$0xff]
      %v1726 = vld [vmem:[#allocation4 + $0x18] sm:$0xff]
      %v1727 = vld [vmem:[#allocation4 + $0x20] sm:$0xff]
      %v1728 = vld [vmem:[#allocation4 + $0x28] sm:$0xff]
      %v1729 = vld [vmem:[#allocation4 + $0x30] sm:$0xff]
      %v1730 = vld [vmem:[#allocation4 + $0x38] sm:$0xff]
      %v1731 = vld [vmem:[#allocation4 + $0x40] sm:$0xff]
      %v1732 = vld [vmem:[#allocation4 + $0x48] sm:$0xff]
      %v1733 = vld [vmem:[#allocation4 + $0x50] sm:$0xff]
      %v1734 = vld [vmem:[#allocation4 + $0x58] sm:$0xff]
      %v1735 = vpack.c.bf16 %v1726, %v1723
      %v1736 = vpack.c.bf16 %v1727, %v1724
      %v1737 = vpack.c.bf16 %v1728, %v1725
      %v1738 = vpack.c.bf16 %v1732, %v1729
      %v1739 = vpack.c.bf16 %v1733, %v1730
      %v1740 = vpack.c.bf16 %v1734, %v1731
      %v1741 = vld [vmem:[%s3 + $0x1] sm:$0x1]
      %v1744 = vunpack.c.l.s4 1966171168
      %v1745 = vunpack.c.0.s8 %v1744
      %v1746 = vlaneseq
      %v1747 = vshrl.u32 %v1746, 7
      %v1748 = vsub.s32 %v1745, %v1747
      %v1749 = vrot.slane %v1741, %v1748
      %v1751 = vunpack.c.l.s4 1966171168
      %v1752 = vunpack.c.0.s8 %v1751
      %v1753 = vlaneseq
      %v1754 = vshrl.u32 %v1753, 7
      %v1755 = vsub.s32 %v1752, %v1754
      %v1756 = vrot.slane %v1749, %v1755
      %1757 = vrot.lane.b32.xlu0 %v1756, 64
      %v1758 = vpop.permute.xlu0 %1757
      %1765 = vrot.lane.b32.xlu0 %v1735, 92
      %v1766 = vpop.permute.xlu0 %1765
      %1767 = vrot.lane.b32.xlu0 %v1736, 92
      %v1768 = vpop.permute.xlu0 %1767
      %1769 = vrot.lane.b32.xlu0 %v1737, 92
      %v1770 = vpop.permute.xlu0 %1769
      %1771 = vrot.lane.b32.xlu0 %v1738, 92
      %v1772 = vpop.permute.xlu0 %1771
      %1773 = vrot.lane.b32.xlu0 %v1739, 92
      %v1774 = vpop.permute.xlu0 %1773
      %1775 = vrot.lane.b32.xlu0 %v1740, 92
      %v1776 = vpop.permute.xlu0 %1775
      %v1777 = vsel %vm593, %v1766, %v1768
      %v1778 = vsel %vm593, %v1768, %v1770
      %v1779 = vsel %vm593, %v1772, %v1774
      %v1780 = vsel %vm593, %v1774, %v1776
      %v1788 = vsel %vm474, %v1758, 0
      %1790 = vmatprep.subr.bf16.mxu0 %v1778
      %1791 = vmatpush1.bf16.msra.mxu0 %v1777
      %1792 = vmatprep.subr.bf16.mxu0 %v1780
      %1793 = vmatpush1.bf16.msra.mxu0 %v1779
      %1794 = vmatprep.subr.bf16.mxu0 0
      %1795 = vmatpush1.bf16.msra.mxu0 0
      %1796 = vmatprep.subr.bf16.mxu0 0
      %1797 = vmatpush1.bf16.msra.mxu0 0
      %1798 = vmatprep.subr.bf16.mxu0 0
      %1799 = vmatpush1.bf16.msra.mxu0 0
      %1800 = vmatprep.subr.bf16.mxu0 0
      %1801 = vmatpush1.bf16.msra.mxu0 0
      %1802 = vmatprep.subr.bf16.mxu0 0
      %1803 = vmatpush1.bf16.msra.mxu0 0
      %1804 = vmatprep.subr.bf16.mxu0 0
      %1805 = vmatpush1.bf16.msra.mxu0 0
      %1806 = vmatprep.subr.bf16.mxu0 0
      %1807 = vmatpush1.bf16.msra.mxu0 0
      %1808 = vmatprep.subr.bf16.mxu0 0
      %1809 = vmatpush1.bf16.msra.mxu0 0
      %1810 = vmatprep.subr.bf16.mxu0 0
      %1811 = vmatpush1.bf16.msra.mxu0 0
      %1812 = vmatprep.subr.bf16.mxu0 0
      %1813 = vmatpush1.bf16.msra.mxu0 0
      %1814 = vmatprep.subr.bf16.mxu0 0
      %1815 = vmatpush1.bf16.msra.mxu0 0
      %1816 = vmatprep.subr.bf16.mxu0 0
      %1817 = vmatpush1.bf16.msra.mxu0 0
      %1818 = vmatprep.subr.bf16.mxu0 0
      %1819 = vmatpush1.bf16.msra.mxu0 0
      %1820 = vmatprep.subr.bf16.mxu0 0
      %1821 = vmatpush1.bf16.msra.mxu0 0
      %1822 = vmatprep.mubr.bf16.mxu0 0
      %1823 = vmatmul.mubr.bf16.gmra.mrb[0].mxu0 %v1788
      %v1824 = vpop.f32.mrb[0].mxu0
      %v1825 = vadd.f32 0.0, %v1824
      %v1826 = vpop.f32.mrb[0].mxu0
      %v1827 = vadd.f32 0.0, %v1826
      %v1828 = vpop.f32.mrb[0].mxu0
      %v1829 = vpop.f32.mrb[0].mxu0
      %1830 = vdwg.mxu0
      %1831 = vmatprep.subr.bf16.mxu0 0
      %1832 = vmatpush1.bf16.msra.mxu0 %v1770
      %1833 = vmatprep.subr.bf16.mxu0 0
      %1834 = vmatpush1.bf16.msra.mxu0 %v1776
      %1835 = vmatprep.subr.bf16.mxu0 0
      %1836 = vmatpush1.bf16.msra.mxu0 0
      %1837 = vmatprep.subr.bf16.mxu0 0
      %1838 = vmatpush1.bf16.msra.mxu0 0
      %1839 = vmatprep.subr.bf16.mxu0 0
      %1840 = vmatpush1.bf16.msra.mxu0 0
      %1841 = vmatprep.subr.bf16.mxu0 0
      %1842 = vmatpush1.bf16.msra.mxu0 0
      %1843 = vmatprep.subr.bf16.mxu0 0
      %1844 = vmatpush1.bf16.msra.mxu0 0
      %1845 = vmatprep.subr.bf16.mxu0 0
      %1846 = vmatpush1.bf16.msra.mxu0 0
      %1847 = vmatprep.subr.bf16.mxu0 0
      %1848 = vmatpush1.bf16.msra.mxu0 0
      %1849 = vmatprep.subr.bf16.mxu0 0
      %1850 = vmatpush1.bf16.msra.mxu0 0
      %1851 = vmatprep.subr.bf16.mxu0 0
      %1852 = vmatpush1.bf16.msra.mxu0 0
      %1853 = vmatprep.subr.bf16.mxu0 0
      %1854 = vmatpush1.bf16.msra.mxu0 0
      %1855 = vmatprep.subr.bf16.mxu0 0
      %1856 = vmatpush1.bf16.msra.mxu0 0
      %1857 = vmatprep.subr.bf16.mxu0 0
      %1858 = vmatpush1.bf16.msra.mxu0 0
      %1859 = vmatprep.subr.bf16.mxu0 0
      %1860 = vmatpush1.bf16.msra.mxu0 0
      %1861 = vmatprep.subr.bf16.mxu0 0
      %1862 = vmatpush1.bf16.msra.mxu0 0
      %1863 = vmatprep.mubr.bf16.mxu0 0
      %1864 = vmatmul.mubr.bf16.gmra.mrb[0].mxu0 %v1788
      %v1865 = vpop.f32.mrb[0].mxu0
      %v1866 = vadd.f32 0.0, %v1865
      %v1867 = vpop.f32.mrb[0].mxu0
      %v1868 = vpop.f32.mrb[0].mxu0
      %v1869 = vpop.f32.mrb[0].mxu0
      %1870 = vdwg.mxu0
      %v1871 = vadd.f32 %v1720, %v1825
      %v1872 = vadd.f32 %v1721, %v1827
      %v1873 = vadd.f32 %v1722, %v1866
      %v1874 = vld [vmem:[#allocation4] sm:$0xff]
      %v1875 = vld [vmem:[#allocation4 + $0x8] sm:$0xff]
      %v1876 = vld [vmem:[#allocation4 + $0x10] sm:$0xff]
      %v1877 = vld [vmem:[#allocation4 + $0x18] sm:$0xff]
      %v1878 = vld [vmem:[#allocation4 + $0x20] sm:$0xff]
      %v1879 = vld [vmem:[#allocation4 + $0x28] sm:$0xff]
      %v1880 = vld [vmem:[#allocation4 + $0x30] sm:$0xff]
      %v1881 = vld [vmem:[#allocation4 + $0x38] sm:$0xff]
      %v1882 = vld [vmem:[#allocation4 + $0x40] sm:$0xff]
      %v1883 = vld [vmem:[#allocation4 + $0x48] sm:$0xff]
      %v1884 = vld [vmem:[#allocation4 + $0x50] sm:$0xff]
      %v1885 = vld [vmem:[#allocation4 + $0x58] sm:$0xff]
      %v1886 = vpack.c.bf16 %v1877, %v1874
      %v1887 = vpack.c.bf16 %v1878, %v1875
      %v1888 = vpack.c.bf16 %v1879, %v1876
      %v1889 = vpack.c.bf16 %v1883, %v1880
      %v1890 = vpack.c.bf16 %v1884, %v1881
      %v1891 = vpack.c.bf16 %v1885, %v1882
      %v1892 = vld [vmem:[%s3 + $0x1] sm:$0x1]
      %v1895 = vunpack.c.l.s4 1966171168
      %v1896 = vunpack.c.0.s8 %v1895
      %v1897 = vlaneseq
      %v1898 = vshrl.u32 %v1897, 7
      %v1899 = vsub.s32 %v1896, %v1898
      %v1900 = vrot.slane %v1892, %v1899
      %v1902 = vunpack.c.l.s4 1966171168
      %v1903 = vunpack.c.0.s8 %v1902
      %v1904 = vlaneseq
      %v1905 = vshrl.u32 %v1904, 7
      %v1906 = vsub.s32 %v1903, %v1905
      %v1907 = vrot.slane %v1900, %v1906
      %1908 = vrot.lane.b32.xlu0 %v1907, 32
      %v1909 = vpop.permute.xlu0 %1908
      %1916 = vrot.lane.b32.xlu0 %v1886, 91
      %v1917 = vpop.permute.xlu0 %1916
      %1918 = vrot.lane.b32.xlu0 %v1887, 91
      %v1919 = vpop.permute.xlu0 %1918
      %1920 = vrot.lane.b32.xlu0 %v1888, 91
      %v1921 = vpop.permute.xlu0 %1920
      %1922 = vrot.lane.b32.xlu0 %v1889, 91
      %v1923 = vpop.permute.xlu0 %1922
      %1924 = vrot.lane.b32.xlu0 %v1890, 91
      %v1925 = vpop.permute.xlu0 %1924
      %1926 = vrot.lane.b32.xlu0 %v1891, 91
      %v1927 = vpop.permute.xlu0 %1926
      %v1928 = vsel %vm614, %v1917, %v1919
      %v1929 = vsel %vm614, %v1919, %v1921
      %v1930 = vsel %vm614, %v1923, %v1925
      %v1931 = vsel %vm614, %v1925, %v1927
      %v1939 = vsel %vm474, %v1909, 0
      %1941 = vmatprep.subr.bf16.mxu0 %v1929
      %1942 = vmatpush1.bf16.msra.mxu0 %v1928
      %1943 = vmatprep.subr.bf16.mxu0 %v1931
      %1944 = vmatpush1.bf16.msra.mxu0 %v1930
      %1945 = vmatprep.subr.bf16.mxu0 0
      %1946 = vmatpush1.bf16.msra.mxu0 0
      %1947 = vmatprep.subr.bf16.mxu0 0
      %1948 = vmatpush1.bf16.msra.mxu0 0
      %1949 = vmatprep.subr.bf16.mxu0 0
      %1950 = vmatpush1.bf16.msra.mxu0 0
      %1951 = vmatprep.subr.bf16.mxu0 0
      %1952 = vmatpush1.bf16.msra.mxu0 0
      %1953 = vmatprep.subr.bf16.mxu0 0
      %1954 = vmatpush1.bf16.msra.mxu0 0
      %1955 = vmatprep.subr.bf16.mxu0 0
      %1956 = vmatpush1.bf16.msra.mxu0 0
      %1957 = vmatprep.subr.bf16.mxu0 0
      %1958 = vmatpush1.bf16.msra.mxu0 0
      %1959 = vmatprep.subr.bf16.mxu0 0
      %1960 = vmatpush1.bf16.msra.mxu0 0
      %1961 = vmatprep.subr.bf16.mxu0 0
      %1962 = vmatpush1.bf16.msra.mxu0 0
      %1963 = vmatprep.subr.bf16.mxu0 0
      %1964 = vmatpush1.bf16.msra.mxu0 0
      %1965 = vmatprep.subr.bf16.mxu0 0
      %1966 = vmatpush1.bf16.msra.mxu0 0
      %1967 = vmatprep.subr.bf16.mxu0 0
      %1968 = vmatpush1.bf16.msra.mxu0 0
      %1969 = vmatprep.subr.bf16.mxu0 0
      %1970 = vmatpush1.bf16.msra.mxu0 0
      %1971 = vmatprep.subr.bf16.mxu0 0
      %1972 = vmatpush1.bf16.msra.mxu0 0
      %1973 = vmatprep.mubr.bf16.mxu0 0
      %1974 = vmatmul.mubr.bf16.gmra.mrb[0].mxu0 %v1939
      %v1975 = vpop.f32.mrb[0].mxu0
      %v1976 = vadd.f32 0.0, %v1975
      %v1977 = vpop.f32.mrb[0].mxu0
      %v1978 = vadd.f32 0.0, %v1977
      %v1979 = vpop.f32.mrb[0].mxu0
      %v1980 = vpop.f32.mrb[0].mxu0
      %1981 = vdwg.mxu0
      %1982 = vmatprep.subr.bf16.mxu0 0
      %1983 = vmatpush1.bf16.msra.mxu0 %v1921
      %1984 = vmatprep.subr.bf16.mxu0 0
      %1985 = vmatpush1.bf16.msra.mxu0 %v1927
      %1986 = vmatprep.subr.bf16.mxu0 0
      %1987 = vmatpush1.bf16.msra.mxu0 0
      %1988 = vmatprep.subr.bf16.mxu0 0
      %1989 = vmatpush1.bf16.msra.mxu0 0
      %1990 = vmatprep.subr.bf16.mxu0 0
      %1991 = vmatpush1.bf16.msra.mxu0 0
      %1992 = vmatprep.subr.bf16.mxu0 0
      %1993 = vmatpush1.bf16.msra.mxu0 0
      %1994 = vmatprep.subr.bf16.mxu0 0
      %1995 = vmatpush1.bf16.msra.mxu0 0
      %1996 = vmatprep.subr.bf16.mxu0 0
      %1997 = vmatpush1.bf16.msra.mxu0 0
      %1998 = vmatprep.subr.bf16.mxu0 0
      %1999 = vmatpush1.bf16.msra.mxu0 0
      %2000 = vmatprep.subr.bf16.mxu0 0
      %2001 = vmatpush1.bf16.msra.mxu0 0
      %2002 = vmatprep.subr.bf16.mxu0 0
      %2003 = vmatpush1.bf16.msra.mxu0 0
      %2004 = vmatprep.subr.bf16.mxu0 0
      %2005 = vmatpush1.bf16.msra.mxu0 0
      %2006 = vmatprep.subr.bf16.mxu0 0
      %2007 = vmatpush1.bf16.msra.mxu0 0
      %2008 = vmatprep.subr.bf16.mxu0 0
      %2009 = vmatpush1.bf16.msra.mxu0 0
      %2010 = vmatprep.subr.bf16.mxu0 0
      %2011 = vmatpush1.bf16.msra.mxu0 0
      %2012 = vmatprep.subr.bf16.mxu0 0
      %2013 = vmatpush1.bf16.msra.mxu0 0
      %2014 = vmatprep.mubr.bf16.mxu0 0
      %2015 = vmatmul.mubr.bf16.gmra.mrb[0].mxu0 %v1939
      %v2016 = vpop.f32.mrb[0].mxu0
      %v2017 = vadd.f32 0.0, %v2016
      %v2018 = vpop.f32.mrb[0].mxu0
      %v2019 = vpop.f32.mrb[0].mxu0
      %v2020 = vpop.f32.mrb[0].mxu0
      %2021 = vdwg.mxu0
      %v2022 = vadd.f32 %v1871, %v1976
      %v2023 = vadd.f32 %v1872, %v1978
      %v2024 = vadd.f32 %v1873, %v2017
      %v2025 = vld [vmem:[#allocation4] sm:$0xff]
      %v2026 = vld [vmem:[#allocation4 + $0x8] sm:$0xff]
      %v2027 = vld [vmem:[#allocation4 + $0x10] sm:$0xff]
      %v2028 = vld [vmem:[#allocation4 + $0x18] sm:$0xff]
      %v2029 = vld [vmem:[#allocation4 + $0x20] sm:$0xff]
      %v2030 = vld [vmem:[#allocation4 + $0x28] sm:$0xff]
      %v2031 = vld [vmem:[#allocation4 + $0x30] sm:$0xff]
      %v2032 = vld [vmem:[#allocation4 + $0x38] sm:$0xff]
      %v2033 = vld [vmem:[#allocation4 + $0x40] sm:$0xff]
      %v2034 = vld [vmem:[#allocation4 + $0x48] sm:$0xff]
      %v2035 = vld [vmem:[#allocation4 + $0x50] sm:$0xff]
      %v2036 = vld [vmem:[#allocation4 + $0x58] sm:$0xff]
      %v2037 = vpack.c.bf16 %v2028, %v2025
      %v2038 = vpack.c.bf16 %v2029, %v2026
      %v2039 = vpack.c.bf16 %v2030, %v2027
      %v2040 = vpack.c.bf16 %v2034, %v2031
      %v2041 = vpack.c.bf16 %v2035, %v2032
      %v2042 = vpack.c.bf16 %v2036, %v2033
      %v2043 = vld [vmem:[%s3 + $0x2] sm:$0x1]
      %2050 = vrot.lane.b32.xlu0 %v2037, 90
      %v2051 = vpop.permute.xlu0 %2050
      %2052 = vrot.lane.b32.xlu0 %v2038, 90
      %v2053 = vpop.permute.xlu0 %2052
      %2054 = vrot.lane.b32.xlu0 %v2039, 90
      %v2055 = vpop.permute.xlu0 %2054
      %2056 = vrot.lane.b32.xlu0 %v2040, 90
      %v2057 = vpop.permute.xlu0 %2056
      %2058 = vrot.lane.b32.xlu0 %v2041, 90
      %v2059 = vpop.permute.xlu0 %2058
      %2060 = vrot.lane.b32.xlu0 %v2042, 90
      %v2061 = vpop.permute.xlu0 %2060
      %v2062 = vsel %vm635, %v2051, %v2053
      %v2063 = vsel %vm635, %v2053, %v2055
      %v2064 = vsel %vm635, %v2057, %v2059
      %v2065 = vsel %vm635, %v2059, %v2061
      %v2073 = vsel %vm474, %v2043, 0
      %2075 = vmatprep.subr.bf16.mxu0 %v2063
      %2076 = vmatpush1.bf16.msra.mxu0 %v2062
      %2077 = vmatprep.subr.bf16.mxu0 %v2065
      %2078 = vmatpush1.bf16.msra.mxu0 %v2064
      %2079 = vmatprep.subr.bf16.mxu0 0
      %2080 = vmatpush1.bf16.msra.mxu0 0
      %2081 = vmatprep.subr.bf16.mxu0 0
      %2082 = vmatpush1.bf16.msra.mxu0 0
      %2083 = vmatprep.subr.bf16.mxu0 0
      %2084 = vmatpush1.bf16.msra.mxu0 0
      %2085 = vmatprep.subr.bf16.mxu0 0
      %2086 = vmatpush1.bf16.msra.mxu0 0
      %2087 = vmatprep.subr.bf16.mxu0 0
      %2088 = vmatpush1.bf16.msra.mxu0 0
      %2089 = vmatprep.subr.bf16.mxu0 0
      %2090 = vmatpush1.bf16.msra.mxu0 0
      %2091 = vmatprep.subr.bf16.mxu0 0
      %2092 = vmatpush1.bf16.msra.mxu0 0
      %2093 = vmatprep.subr.bf16.mxu0 0
      %2094 = vmatpush1.bf16.msra.mxu0 0
      %2095 = vmatprep.subr.bf16.mxu0 0
      %2096 = vmatpush1.bf16.msra.mxu0 0
      %2097 = vmatprep.subr.bf16.mxu0 0
      %2098 = vmatpush1.bf16.msra.mxu0 0
      %2099 = vmatprep.subr.bf16.mxu0 0
      %2100 = vmatpush1.bf16.msra.mxu0 0
      %2101 = vmatprep.subr.bf16.mxu0 0
      %2102 = vmatpush1.bf16.msra.mxu0 0
      %2103 = vmatprep.subr.bf16.mxu0 0
      %2104 = vmatpush1.bf16.msra.mxu0 0
      %2105 = vmatprep.subr.bf16.mxu0 0
      %2106 = vmatpush1.bf16.msra.mxu0 0
      %2107 = vmatprep.mubr.bf16.mxu0 0
      %2108 = vmatmul.mubr.bf16.gmra.mrb[0].mxu0 %v2073
      %v2109 = vpop.f32.mrb[0].mxu0
      %v2110 = vadd.f32 0.0, %v2109
      %v2111 = vpop.f32.mrb[0].mxu0
      %v2112 = vadd.f32 0.0, %v2111
      %v2113 = vpop.f32.mrb[0].mxu0
      %v2114 = vpop.f32.mrb[0].mxu0
      %2115 = vdwg.mxu0
      %2116 = vmatprep.subr.bf16.mxu0 0
      %2117 = vmatpush1.bf16.msra.mxu0 %v2055
      %2118 = vmatprep.subr.bf16.mxu0 0
      %2119 = vmatpush1.bf16.msra.mxu0 %v2061
      %2120 = vmatprep.subr.bf16.mxu0 0
      %2121 = vmatpush1.bf16.msra.mxu0 0
      %2122 = vmatprep.subr.bf16.mxu0 0
      %2123 = vmatpush1.bf16.msra.mxu0 0
      %2124 = vmatprep.subr.bf16.mxu0 0
      %2125 = vmatpush1.bf16.msra.mxu0 0
      %2126 = vmatprep.subr.bf16.mxu0 0
      %2127 = vmatpush1.bf16.msra.mxu0 0
      %2128 = vmatprep.subr.bf16.mxu0 0
      %2129 = vmatpush1.bf16.msra.mxu0 0
      %2130 = vmatprep.subr.bf16.mxu0 0
      %2131 = vmatpush1.bf16.msra.mxu0 0
      %2132 = vmatprep.subr.bf16.mxu0 0
      %2133 = vmatpush1.bf16.msra.mxu0 0
      %2134 = vmatprep.subr.bf16.mxu0 0
      %2135 = vmatpush1.bf16.msra.mxu0 0
      %2136 = vmatprep.subr.bf16.mxu0 0
      %2137 = vmatpush1.bf16.msra.mxu0 0
      %2138 = vmatprep.subr.bf16.mxu0 0
      %2139 = vmatpush1.bf16.msra.mxu0 0
      %2140 = vmatprep.subr.bf16.mxu0 0
      %2141 = vmatpush1.bf16.msra.mxu0 0
      %2142 = vmatprep.subr.bf16.mxu0 0
      %2143 = vmatpush1.bf16.msra.mxu0 0
      %2144 = vmatprep.subr.bf16.mxu0 0
      %2145 = vmatpush1.bf16.msra.mxu0 0
      %2146 = vmatprep.subr.bf16.mxu0 0
      %2147 = vmatpush1.bf16.msra.mxu0 0
      %2148 = vmatprep.mubr.bf16.mxu0 0
      %2149 = vmatmul.mubr.bf16.gmra.mrb[0].mxu0 %v2073
      %v2150 = vpop.f32.mrb[0].mxu0
      %v2151 = vadd.f32 0.0, %v2150
      %v2152 = vpop.f32.mrb[0].mxu0
      %v2153 = vpop.f32.mrb[0].mxu0
      %v2154 = vpop.f32.mrb[0].mxu0
      %2155 = vdwg.mxu0
      %v2156 = vadd.f32 %v2022, %v2110
      %v2157 = vadd.f32 %v2023, %v2112
      %v2158 = vadd.f32 %v2024, %v2151
      %v2159 = vld [vmem:[#allocation5] sm:$0x1]
      %2161 = vset.pattern.permute.xlu0 0
      %2162 = vperm.xlu0 %2161, %v2159
      %v2163 = vpop.permute.xlu0 %2162
      %v2165 = vlaneseq
      %v2166 = vshrl.u32 %v2165, 7
      %v2167 = vsub.s32 0, %v2166
      %v2168 = vrot.slane %v2163, %v2167
      %v2169 = vadd.f32 %v2156, %v2168
      %v2170 = vadd.f32 %v2157, %v2168
      %v2171 = vadd.f32 %v2158, %v2168
      %v2175 = vcombine.low %v2169, %v2170
      %v2177 = vunpack.c.l.s4 1966171168
      %v2178 = vunpack.c.0.s8 %v2177
      %v2179 = vlaneseq
      %v2180 = vshrl.u32 %v2179, 7
      %v2181 = vsub.s32 %v2178, %v2180
      %v2182 = vrot.slane %v2175, %v2181
      %v2184 = vunpack.c.l.s4 1966171168
      %v2185 = vunpack.c.0.s8 %v2184
      %v2186 = vlaneseq
      %v2187 = vshrl.u32 %v2186, 7
      %v2188 = vsub.s32 %v2185, %v2187
      %v2189 = vrot.slane %v2171, %v2188
      %v2190 = vcombine.low %v2182, %v2189
      %v2192 = vunpack.c.l.s4 1966171168
      %v2193 = vunpack.c.0.s8 %v2192
      %v2194 = vlaneseq
      %v2195 = vshrl.u32 %v2194, 7
      %v2196 = vsub.s32 %v2193, %v2195
      %v2197 = vrot.slane %v2190, %v2196
      %v2199 = vlaneseq
      %vm2200 = vcmp.ge.s32.totalorder %v2199, 0
      %vm2201 = vcmp.lt.s32.totalorder %v2199, 288
      %vm2202 = vmand %vm2200, %vm2201
      %2203 = vst.msk [vmem:[%s224] sm:$0x7] %vm2202, %v2197
      %p2204 = scmp.lt.s32.totalorder %s18, 1
      %s2205 = scalar_select %p2204, %s18, 1
      %s2206 = smul.addr %s2205, 3
      %s2207 = scalar_lea.vmem %s5, %s2206
      // Predicated region
      $region41: #{disp_head_pallas.1} parent=39 // pred_check
        %p2208 = pneg %p146
      $region42: #{disp_head_pallas.1} parent=39 // pred_check_branch
        %2210 = sbr.rel (%p2208) target = $region44
      $region43: #{disp_head_pallas.1} parent=39 // pred_region
        _
      $region44: #{disp_head_pallas.1} parent=39 // pred_fallthru
        _
    $region40: #{disp_head_pallas.1} parent=5 // pred_fallthru
      _
    %p2211 = scmp.le.s32.totalorder 2, %s13
    // Predicated region
    $region45: #{disp_head_pallas.1} parent=5 // pred_check
      %p2212 = pneg %p2211
    $region46: #{disp_head_pallas.1} parent=5 // pred_check_branch
      %2214 = sbr.rel (%p2212) target = $region48
    $region47: #{disp_head_pallas.1} parent=5 // pred_region
      %s2215 = ssub.s32 %s13, 2
      // Predicated region
      $region49: #{disp_head_pallas.1} parent=47 // pred_check
        %p2216 = pneg %p152
      $region50: #{disp_head_pallas.1} parent=47 // pred_check_branch
        %2218 = sbr.rel (%p2216) target = $region52
      $region51: #{disp_head_pallas.1} parent=47 // pred_region
        %p2219 = scmp.lt.s32.totalorder %s19, 1
        %s2220 = scalar_select %p2219, %s19, 1
        %s2221 = smul.addr %s2220, 3
        %s2222 = scalar_lea.vmem %s5, %s2221
      $region52: #{disp_head_pallas.1} parent=47 // pred_fallthru
        _
    $region48: #{disp_head_pallas.1} parent=5 // pred_fallthru
      _
  $region6: #{disp_head_pallas.1} parent=0 // loop_footer
    %s17 = sadd.s32 1, %s13
  $region7: #{disp_head_pallas.1} parent=0 // loop_footer_branch
    %12 = sbr.rel target = $region3
  $region8: #{disp_head_pallas.1} parent=0 // loop_exit
    _

</llo_original>
